<compile_context>
chip_gen: v5e
topology: v5e:2x2
jax: 0.10.0
libtpu: 0.0.40
codegen_flags: <defaults>
</compile_context>

<pallas_src>
import functools

import jax
import jax.numpy as jnp
from jax.experimental import pallas as pl
from jax.experimental.pallas import tpu as pltpu

IN_FEATURES = 28 * 28    # 784
OUT_FEATURES = 10
NEG_SLOPE = 0.04
TM_DEFAULT = 2048        # batch-tile rows (multiple of 8)


def _neroro_kernel(x_ref, w_ref, b_ref, o_ref):
    # Cast the streamed x tile inside VMEM (no wrapper-side f32 copy in HBM).
    x = x_ref[...].astype(jnp.float32)
    # (TM, 784) @ (784, 10) on the MXU; HIGHEST precision ~= fp32 nn.Linear.
    z = jnp.dot(x, w_ref[...],
                preferred_element_type=jnp.float32,
                precision=jax.lax.Precision.HIGHEST)
    z = z + b_ref[...]                                   # broadcast (1, 10)
    # LeakyReLU(negative_slope=0.04)
    o_ref[...] = jnp.where(z > 0, z, NEG_SLOPE * z).astype(o_ref.dtype)


@functools.partial(jax.jit, static_argnames=("tm",))
def neroro_forward(x, w, b, *, tm=TM_DEFAULT):
    """x: any shape whose trailing dims flatten to 784 (e.g. (B, 1, 28, 28)),
       any float/int dtype (cast to f32 inside the kernel).
    w: (784, 10) (transpose of PyTorch nn.Linear weight (10, 784)).
    b: (10,).
    Returns (B, 10) float32, matching the PyTorch forward."""
    x2d = x.reshape(-1, IN_FEATURES)          # metadata-only reshape, native dtype
    batch = x2d.shape[0]

    # Batch tile: multiple of 8 (f32 sublane), capped at `tm`, never absurdly
    # larger than the batch itself.
    tm_eff = min(tm, max(8, ((batch + 7) // 8) * 8))
    grid = (pl.cdiv(batch, tm_eff),)          # ragged last block handled by Pallas

    w32 = w.astype(jnp.float32)
    b2d = b.astype(jnp.float32).reshape(1, OUT_FEATURES)

    out = pl.pallas_call(
        _neroro_kernel,
        out_shape=jax.ShapeDtypeStruct((batch, OUT_FEATURES), jnp.float32),
        grid=grid,
        in_specs=[
            # x: streamed / double-buffered tile of TM rows, native dtype
            pl.BlockSpec((tm_eff, IN_FEATURES), lambda i: (i, 0)),
            # weight & bias: resident in VMEM for the whole grid
            pl.BlockSpec((IN_FEATURES, OUT_FEATURES), lambda i: (0, 0)),
            pl.BlockSpec((1, OUT_FEATURES), lambda i: (0, 0)),
        ],
        # Last dim (10) equals the full array dim -> legal block shape.
        out_specs=pl.BlockSpec((tm_eff, OUT_FEATURES), lambda i: (i, 0)),
        compiler_params=pltpu.CompilerParams(
            dimension_semantics=("parallel",),
            vmem_limit_bytes=40 << 20),
        cost_estimate=pl.CostEstimate(
            flops=2 * batch * IN_FEATURES * OUT_FEATURES,
            bytes_accessed=(batch * IN_FEATURES * x2d.dtype.itemsize
                            + IN_FEATURES * OUT_FEATURES * 4
                            + OUT_FEATURES * 4
                            + batch * OUT_FEATURES * 4),
            transcendentals=0),
    )(x2d, w32, b2d)

    return out


def init_params(key):
    """Deterministic init mirroring nn.Linear's default (uniform +-1/sqrt(fan_in)).
    Weight is stored transposed: (in_features, out_features)."""
    kw, kb = jax.random.split(key)
    bound = 1.0 / jnp.sqrt(jnp.float32(IN_FEATURES))
    w = jax.random.uniform(kw, (IN_FEATURES, OUT_FEATURES), jnp.float32,
                           minval=-bound, maxval=bound)
    b = jax.random.uniform(kb, (OUT_FEATURES,), jnp.float32,
                           minval=-bound, maxval=bound)
    return w, b


if __name__ == "__main__":
    key = jax.random.PRNGKey(0)
    k_x, k_p = jax.random.split(key)

    # Small MNIST-style input: batch=2, NCHW [2, 1, 28, 28]
    x = jax.random.normal(k_x, (2, 1, 28, 28), jnp.float32)
    w, b = init_params(k_p)

    out = neroro_forward(x, w, b)
    out = jax.block_until_ready(out)

    # Reference check in plain JAX (same math as the PyTorch module)
    z_ref = x.reshape(-1, IN_FEATURES).astype(jnp.float32) @ w + b[None, :]
    ref = jnp.where(z_ref > 0, z_ref, NEG_SLOPE * z_ref)
    assert out.shape == (2, OUT_FEATURES)
    assert jnp.allclose(out, ref, atol=1e-5, rtol=1e-5)

    print("KERNEL_OK")
</pallas_src>

<mosaic_0001>
module attributes {stable_mosaic.version = 11 : i64} {
  func.func @_neroro_kernel(%arg0: i32, %arg1: memref<8x784xf32, #tpu.memory_space<vmem>>, %arg2: memref<784x10xf32, #tpu.memory_space<vmem>>, %arg3: memref<1x10xf32, #tpu.memory_space<vmem>>, %arg4: memref<8x10xf32, #tpu.memory_space<vmem>>) attributes {dimension_semantics = [#tpu.dimension_semantics<parallel>], iteration_bounds = array<i64: 1>, scalar_prefetch = 0 : i64, scratch_operands = 0 : i64, tpu.core_type = #tpu.core_type<tc>, window_params = [{transform_indices = @transform_0, window_bounds = array<i64: 8, 784>}, {pipeline_mode = #tpu.pipeline_mode<synchronous>, transform_indices = @transform_1, window_bounds = array<i64: 784, 10>}, {pipeline_mode = #tpu.pipeline_mode<synchronous>, transform_indices = @transform_2, window_bounds = array<i64: 1, 10>}, {transform_indices = @transform_3, window_bounds = array<i64: 8, 10>}]} {
    %c0 = arith.constant 0 : index
    %c0_0 = arith.constant 0 : index
    %0 = vector.load %arg1[%c0, %c0_0] : memref<8x784xf32, #tpu.memory_space<vmem>>, vector<8x784xf32>
    %c0_1 = arith.constant 0 : index
    %c0_2 = arith.constant 0 : index
    %1 = vector.load %arg2[%c0_1, %c0_2] : memref<784x10xf32, #tpu.memory_space<vmem>>, vector<784x10xf32>
    %cst = arith.constant dense<0.000000e+00> : vector<8x10xf32>
    %2 = tpu.matmul %0, %1, %cst {dimension_numbers = #tpu.dot_dimension_numbers<[1], [0], [0], [1], [0, 0, 1, 1], [], []>, precision = #tpu.contract_precision<fp32>} : vector<8x784xf32>, vector<784x10xf32>, vector<8x10xf32> -> vector<8x10xf32>
    %c0_3 = arith.constant 0 : index
    %c0_4 = arith.constant 0 : index
    %3 = vector.load %arg3[%c0_3, %c0_4] : memref<1x10xf32, #tpu.memory_space<vmem>>, vector<1x10xf32>
    %4 = vector.broadcast %3 : vector<1x10xf32> to vector<8x10xf32>
    %5 = arith.addf %2, %4 : vector<8x10xf32>
    %cst_5 = arith.constant 0.000000e+00 : f32
    %6 = vector.broadcast %cst_5 : f32 to vector<8x10xf32>
    %7 = arith.cmpf ogt, %5, %6 : vector<8x10xf32>
    %cst_6 = arith.constant 4.000000e-02 : f32
    %8 = vector.broadcast %cst_6 : f32 to vector<8x10xf32>
    %9 = arith.mulf %8, %5 : vector<8x10xf32>
    %10 = arith.select %7, %5, %9 : vector<8x10xi1>, vector<8x10xf32>
    %c0_7 = arith.constant 0 : index
    %c0_8 = arith.constant 0 : index
    %11 = vector.load %arg4[%c0_7, %c0_8] : memref<8x10xf32, #tpu.memory_space<vmem>>, vector<8x10xf32>
    tpu.vector_store %arg4[%c0_7, %c0_8], %10 {strides = array<i32>} : memref<8x10xf32, #tpu.memory_space<vmem>>, vector<8x10xf32>,
    return
  }
  func.func @transform_0(%arg0: i32) -> (i32, i32) {
    %c0_i32 = arith.constant 0 : i32
    %c0_i32_0 = arith.constant 0 : i32
    return %arg0, %c0_i32 : i32, i32
  }
  func.func @transform_1(%arg0: i32) -> (i32, i32) {
    %c0_i32 = arith.constant 0 : i32
    %c0_i32_0 = arith.constant 0 : i32
    %c0_i32_1 = arith.constant 0 : i32
    return %c0_i32, %c0_i32_0 : i32, i32
  }
  func.func @transform_2(%arg0: i32) -> (i32, i32) {
    %c0_i32 = arith.constant 0 : i32
    %c0_i32_0 = arith.constant 0 : i32
    %c0_i32_1 = arith.constant 0 : i32
    return %c0_i32, %c0_i32_0 : i32, i32
  }
  func.func @transform_3(%arg0: i32) -> (i32, i32) {
    %c0_i32 = arith.constant 0 : i32
    %c0_i32_0 = arith.constant 0 : i32
    return %arg0, %c0_i32 : i32, i32
  }
}

</mosaic_0001>

<llo_original>
// kernel: neroro_forward.1
$region0: #{neroro_forward.1}
  #allocation0 [shape = 'u32[]', space=smem, size = 0x4, offset = 0x4, fixed_abs, tag = 'smem constant byte address 0x4 - core index']
  #allocation1 [shape = 'u32[72,128]{1,0:T(1,128)}', space=vmem, size = 0x9000, scoped, tag = 'internal scratch']
  %s0 = inlined_call_operand.vmem [shape: f32[2,784], index: 0, kind: input, shape index: {}]
  %s1 = inlined_call_operand.vmem [shape: f32[784,10], index: 1, kind: input, shape index: {}]
  %s2 = inlined_call_operand.vmem [shape: f32[1,10], index: 2, kind: input, shape index: {}]
  %s3 = inlined_call_operand.hbm [shape: f32[2,10], index: 3, kind: output, shape index: {}]
  %s4 = sld [smem:[#allocation0]]
  $region22: #{neroro_forward.1} parent=0
    _
  %s6 = ssub.s32 1, %s4
  %s7 = scalar_select 0, %s6, %s4
  $region1: #{neroro_forward.1} parent=0
    #allocation2 [shape = 'u8[4096]{0}', space=vmem, size = 0x1000, scoped, tag = 'output window, operand 0, single buffered']
    #allocation3 [shape = 's32[1]{0}', space=sflag, size = 0x4, scoped, tag = 'scoped memory for neroro_forward.1']
    %8 = vsyncpa [#allocation3], 0
    // Predicated region
    $region2: #{neroro_forward.1} parent=1 // pred_check
      _
    $region3: #{neroro_forward.1} parent=1 // pred_check_branch
      %10 = sbr.rel (0) target = $region5
    $region4: #{neroro_forward.1} parent=1 // pred_region
      _
    $region5: #{neroro_forward.1} parent=1 // pred_fallthru
      _
    // Predicated region
    $region6: #{neroro_forward.1} parent=1 // pred_check
      _
    $region7: #{neroro_forward.1} parent=1 // pred_check_branch
      %12 = sbr.rel (0) target = $region9
    $region8: #{neroro_forward.1} parent=1 // pred_region
      _
    $region9: #{neroro_forward.1} parent=1 // pred_fallthru
      _
    // Predicated region
    $region10: #{neroro_forward.1} parent=1 // pred_check
      _
    $region11: #{neroro_forward.1} parent=1 // pred_check_branch
      %14 = sbr.rel (0) target = $region13
    $region12: #{neroro_forward.1} parent=1 // pred_region
      _
    $region13: #{neroro_forward.1} parent=1 // pred_fallthru
      _
    %v15 = vld [vmem:[%s0] sm:$0xff]
    %v16 = vld [vmem:[%s0 + $0x8] sm:$0x3f]
    %v17 = vld [vmem:[%s0 + $0xe] sm:$0xff]
    %v18 = vld [vmem:[%s0 + $0x16] sm:$0x3f]
    %v19 = vld [vmem:[%s0 + $0x1c] sm:$0xff]
    %v20 = vld [vmem:[%s0 + $0x24] sm:$0x3f]
    %v21 = vld [vmem:[%s0 + $0x2a] sm:$0xff]
    %v22 = vld [vmem:[%s0 + $0x32] sm:$0x3f]
    %v23 = vld [vmem:[%s1] sm:$0xff]
    %v24 = vld [vmem:[%s1 + $0x8] sm:$0xff]
    %v25 = vld [vmem:[%s1 + $0x10] sm:$0xff]
    %v26 = vld [vmem:[%s1 + $0x18] sm:$0xff]
    %v27 = vld [vmem:[%s1 + $0x20] sm:$0xff]
    %v28 = vld [vmem:[%s1 + $0x28] sm:$0xff]
    %v29 = vld [vmem:[%s1 + $0x30] sm:$0xff]
    %v30 = vld [vmem:[%s1 + $0x38] sm:$0xff]
    %v31 = vld [vmem:[%s1 + $0x40] sm:$0xff]
    %v32 = vld [vmem:[%s1 + $0x48] sm:$0xff]
    %v33 = vld [vmem:[%s1 + $0x50] sm:$0xff]
    %v34 = vld [vmem:[%s1 + $0x58] sm:$0xff]
    %v35 = vld [vmem:[%s1 + $0x60] sm:$0xff]
    %v36 = vld [vmem:[%s1 + $0x68] sm:$0xff]
    %v37 = vld [vmem:[%s1 + $0x70] sm:$0xff]
    %v38 = vld [vmem:[%s1 + $0x78] sm:$0xff]
    %v39 = vld [vmem:[%s1 + $0x80] sm:$0xff]
    %v40 = vld [vmem:[%s1 + $0x88] sm:$0xff]
    %v41 = vld [vmem:[%s1 + $0x90] sm:$0xff]
    %v42 = vld [vmem:[%s1 + $0x98] sm:$0xff]
    %v43 = vld [vmem:[%s1 + $0xa0] sm:$0xff]
    %v44 = vld [vmem:[%s1 + $0xa8] sm:$0xff]
    %v45 = vld [vmem:[%s1 + $0xb0] sm:$0xff]
    %v46 = vld [vmem:[%s1 + $0xb8] sm:$0xff]
    %v47 = vld [vmem:[%s1 + $0xc0] sm:$0xff]
    %v48 = vld [vmem:[%s1 + $0xc8] sm:$0xff]
    %v49 = vld [vmem:[%s1 + $0xd0] sm:$0xff]
    %v50 = vld [vmem:[%s1 + $0xd8] sm:$0xff]
    %v51 = vld [vmem:[%s1 + $0xe0] sm:$0xff]
    %v52 = vld [vmem:[%s1 + $0xe8] sm:$0xff]
    %v53 = vld [vmem:[%s1 + $0xf0] sm:$0xff]
    %v54 = vld [vmem:[%s1 + $0xf8] sm:$0xff]
    %v55 = vld [vmem:[%s1 + $0x100] sm:$0xff]
    %v56 = vld [vmem:[%s1 + $0x108] sm:$0xff]
    %v57 = vld [vmem:[%s1 + $0x110] sm:$0xff]
    %v58 = vld [vmem:[%s1 + $0x118] sm:$0xff]
    %v59 = vld [vmem:[%s1 + $0x120] sm:$0xff]
    %v60 = vld [vmem:[%s1 + $0x128] sm:$0xff]
    %v61 = vld [vmem:[%s1 + $0x130] sm:$0xff]
    %v62 = vld [vmem:[%s1 + $0x138] sm:$0xff]
    %v63 = vld [vmem:[%s1 + $0x140] sm:$0xff]
    %v64 = vld [vmem:[%s1 + $0x148] sm:$0xff]
    %v65 = vld [vmem:[%s1 + $0x150] sm:$0xff]
    %v66 = vld [vmem:[%s1 + $0x158] sm:$0xff]
    %v67 = vld [vmem:[%s1 + $0x160] sm:$0xff]
    %v68 = vld [vmem:[%s1 + $0x168] sm:$0xff]
    %v69 = vld [vmem:[%s1 + $0x170] sm:$0xff]
    %v70 = vld [vmem:[%s1 + $0x178] sm:$0xff]
    %v71 = vld [vmem:[%s1 + $0x180] sm:$0xff]
    %v72 = vld [vmem:[%s1 + $0x188] sm:$0xff]
    %v73 = vld [vmem:[%s1 + $0x190] sm:$0xff]
    %v74 = vld [vmem:[%s1 + $0x198] sm:$0xff]
    %v75 = vld [vmem:[%s1 + $0x1a0] sm:$0xff]
    %v76 = vld [vmem:[%s1 + $0x1a8] sm:$0xff]
    %v77 = vld [vmem:[%s1 + $0x1b0] sm:$0xff]
    %v78 = vld [vmem:[%s1 + $0x1b8] sm:$0xff]
    %v79 = vld [vmem:[%s1 + $0x1c0] sm:$0xff]
    %v80 = vld [vmem:[%s1 + $0x1c8] sm:$0xff]
    %v81 = vld [vmem:[%s1 + $0x1d0] sm:$0xff]
    %v82 = vld [vmem:[%s1 + $0x1d8] sm:$0xff]
    %v83 = vld [vmem:[%s1 + $0x1e0] sm:$0xff]
    %v84 = vld [vmem:[%s1 + $0x1e8] sm:$0xff]
    %v85 = vld [vmem:[%s1 + $0x1f0] sm:$0xff]
    %v86 = vld [vmem:[%s1 + $0x1f8] sm:$0xff]
    %v87 = vld [vmem:[%s1 + $0x200] sm:$0xff]
    %v88 = vld [vmem:[%s1 + $0x208] sm:$0xff]
    %v89 = vld [vmem:[%s1 + $0x210] sm:$0xff]
    %v90 = vld [vmem:[%s1 + $0x218] sm:$0xff]
    %v91 = vld [vmem:[%s1 + $0x220] sm:$0xff]
    %v92 = vld [vmem:[%s1 + $0x228] sm:$0xff]
    %v93 = vld [vmem:[%s1 + $0x230] sm:$0xff]
    %v94 = vld [vmem:[%s1 + $0x238] sm:$0xff]
    %v95 = vld [vmem:[%s1 + $0x240] sm:$0xff]
    %v96 = vld [vmem:[%s1 + $0x248] sm:$0xff]
    %v97 = vld [vmem:[%s1 + $0x250] sm:$0xff]
    %v98 = vld [vmem:[%s1 + $0x258] sm:$0xff]
    %v99 = vld [vmem:[%s1 + $0x260] sm:$0xff]
    %v100 = vld [vmem:[%s1 + $0x268] sm:$0xff]
    %v101 = vld [vmem:[%s1 + $0x270] sm:$0xff]
    %v102 = vld [vmem:[%s1 + $0x278] sm:$0xff]
    %v103 = vld [vmem:[%s1 + $0x280] sm:$0xff]
    %v104 = vld [vmem:[%s1 + $0x288] sm:$0xff]
    %v105 = vld [vmem:[%s1 + $0x290] sm:$0xff]
    %v106 = vld [vmem:[%s1 + $0x298] sm:$0xff]
    %v107 = vld [vmem:[%s1 + $0x2a0] sm:$0xff]
    %v108 = vld [vmem:[%s1 + $0x2a8] sm:$0xff]
    %v109 = vld [vmem:[%s1 + $0x2b0] sm:$0xff]
    %v110 = vld [vmem:[%s1 + $0x2b8] sm:$0xff]
    %v111 = vld [vmem:[%s1 + $0x2c0] sm:$0xff]
    %v112 = vld [vmem:[%s1 + $0x2c8] sm:$0xff]
    %v113 = vld [vmem:[%s1 + $0x2d0] sm:$0xff]
    %v114 = vld [vmem:[%s1 + $0x2d8] sm:$0xff]
    %v115 = vld [vmem:[%s1 + $0x2e0] sm:$0xff]
    %v116 = vld [vmem:[%s1 + $0x2e8] sm:$0xff]
    %v117 = vld [vmem:[%s1 + $0x2f0] sm:$0xff]
    %v118 = vld [vmem:[%s1 + $0x2f8] sm:$0xff]
    %v119 = vld [vmem:[%s1 + $0x300] sm:$0xff]
    %v120 = vld [vmem:[%s1 + $0x308] sm:$0xff]
    %v121 = vld [vmem:[%s2] sm:$0x1]
    %v123 = vperm.slane %v121, 0
    %133 = vst [vmem:[#allocation1] ss:$4 sm:$0xff] %v15
    %s134 = scalar_lea.vmem [#allocation1], 1
    %135 = vst [vmem:[%s134] ss:$4 sm:$0xff] %v17
    %s136 = scalar_lea.vmem [#allocation1], 2
    %137 = vst [vmem:[%s136] ss:$4 sm:$0xff] %v19
    %s138 = scalar_lea.vmem [#allocation1], 3
    %139 = vst [vmem:[%s138] ss:$4 sm:$0xff] %v21
    %s140 = scalar_lea.vmem [#allocation1], 32
    %141 = vst [vmem:[%s140] ss:$4 sm:$0xff] %v16
    %s142 = scalar_lea.vmem [#allocation1], 33
    %143 = vst [vmem:[%s142] ss:$4 sm:$0xff] %v18
    %s144 = scalar_lea.vmem [#allocation1], 34
    %145 = vst [vmem:[%s144] ss:$4 sm:$0xff] %v20
    %s146 = scalar_lea.vmem [#allocation1], 35
    %147 = vst [vmem:[%s146] ss:$4 sm:$0xff] %v22
    %v148 = vld.sshfl [vmem:[#allocation1] sm:$0xff pattern:$0x73625140]
    %v149 = vld.sshfl [vmem:[#allocation1 + $0x8] sm:$0xff pattern:$0x73625140]
    %v150 = vld.sshfl [vmem:[#allocation1 + $0x10] sm:$0xff pattern:$0x73625140]
    %v151 = vld.sshfl [vmem:[#allocation1 + $0x18] sm:$0xff pattern:$0x73625140]
    %v152 = vld.sshfl [vmem:[#allocation1 + $0x20] sm:$0xff pattern:$0x73625140]
    %v153 = vld.sshfl [vmem:[#allocation1 + $0x28] sm:$0xff pattern:$0x73625140]
    %v154 = vld.sshfl [vmem:[#allocation1 + $0x30] sm:$0xff pattern:$0x73625140]
    %vm161 = vcmask 130048
    %v162 = vsel %vm161, %v154, 0
    %v164 = vand.u32 %v38, 4294901760
    %165 = vmatpush.msra.mxu0 %v164
    %v166 = vand.u32 %v37, 4294901760
    %167 = vmatpush.msra.mxu0 %v166
    %v168 = vand.u32 %v36, 4294901760
    %169 = vmatpush.msra.mxu0 %v168
    %v170 = vand.u32 %v35, 4294901760
    %171 = vmatpush.msra.mxu0 %v170
    %v172 = vand.u32 %v34, 4294901760
    %173 = vmatpush.msra.mxu0 %v172
    %v174 = vand.u32 %v33, 4294901760
    %175 = vmatpush.msra.mxu0 %v174
    %v176 = vand.u32 %v32, 4294901760
    %177 = vmatpush.msra.mxu0 %v176
    %v178 = vand.u32 %v31, 4294901760
    %179 = vmatpush.msra.mxu0 %v178
    %v180 = vand.u32 %v30, 4294901760
    %181 = vmatpush.msra.mxu0 %v180
    %v182 = vand.u32 %v29, 4294901760
    %183 = vmatpush.msra.mxu0 %v182
    %v184 = vand.u32 %v28, 4294901760
    %185 = vmatpush.msra.mxu0 %v184
    %v186 = vand.u32 %v27, 4294901760
    %187 = vmatpush.msra.mxu0 %v186
    %v188 = vand.u32 %v26, 4294901760
    %189 = vmatpush.msra.mxu0 %v188
    %v190 = vand.u32 %v25, 4294901760
    %191 = vmatpush.msra.mxu0 %v190
    %v192 = vand.u32 %v24, 4294901760
    %193 = vmatpush.msra.mxu0 %v192
    %v194 = vand.u32 %v23, 4294901760
    %195 = vmatpush.msra.mxu0 %v194
    %v196 = vand.u32 %v148, 4294901760
    %v197 = vsub.f32 %v148, %v196
    %v198 = vand.u32 %v197, 4294901760
    %v199 = vsub.f32 %v197, %v198
    %v200 = vand.u32 %v199, 4294901760
    %201 = vmatmul.f32.gmra.mxu0 %v200
    %v202 = vpop.f32.mrf.mxu0
    %v203 = vadd.f32 %v123, %v202
    %204 = vdwg.mxu0
    %v205 = vand.u32 %v38, 4294901760
    %v206 = vsub.f32 %v38, %v205
    %v207 = vand.u32 %v206, 4294901760
    %v208 = vsub.f32 %v206, %v207
    %v209 = vand.u32 %v208, 4294901760
    %210 = vmatpush.msra.mxu0 %v209
    %v211 = vand.u32 %v37, 4294901760
    %v212 = vsub.f32 %v37, %v211
    %v213 = vand.u32 %v212, 4294901760
    %v214 = vsub.f32 %v212, %v213
    %v215 = vand.u32 %v214, 4294901760
    %216 = vmatpush.msra.mxu0 %v215
    %v217 = vand.u32 %v36, 4294901760
    %v218 = vsub.f32 %v36, %v217
    %v219 = vand.u32 %v218, 4294901760
    %v220 = vsub.f32 %v218, %v219
    %v221 = vand.u32 %v220, 4294901760
    %222 = vmatpush.msra.mxu0 %v221
    %v223 = vand.u32 %v35, 4294901760
    %v224 = vsub.f32 %v35, %v223
    %v225 = vand.u32 %v224, 4294901760
    %v226 = vsub.f32 %v224, %v225
    %v227 = vand.u32 %v226, 4294901760
    %228 = vmatpush.msra.mxu0 %v227
    %v229 = vand.u32 %v34, 4294901760
    %v230 = vsub.f32 %v34, %v229
    %v231 = vand.u32 %v230, 4294901760
    %v232 = vsub.f32 %v230, %v231
    %v233 = vand.u32 %v232, 4294901760
    %234 = vmatpush.msra.mxu0 %v233
    %v235 = vand.u32 %v33, 4294901760
    %v236 = vsub.f32 %v33, %v235
    %v237 = vand.u32 %v236, 4294901760
    %v238 = vsub.f32 %v236, %v237
    %v239 = vand.u32 %v238, 4294901760
    %240 = vmatpush.msra.mxu0 %v239
    %v241 = vand.u32 %v32, 4294901760
    %v242 = vsub.f32 %v32, %v241
    %v243 = vand.u32 %v242, 4294901760
    %v244 = vsub.f32 %v242, %v243
    %v245 = vand.u32 %v244, 4294901760
    %246 = vmatpush.msra.mxu0 %v245
    %v247 = vand.u32 %v31, 4294901760
    %v248 = vsub.f32 %v31, %v247
    %v249 = vand.u32 %v248, 4294901760
    %v250 = vsub.f32 %v248, %v249
    %v251 = vand.u32 %v250, 4294901760
    %252 = vmatpush.msra.mxu0 %v251
    %v253 = vand.u32 %v30, 4294901760
    %v254 = vsub.f32 %v30, %v253
    %v255 = vand.u32 %v254, 4294901760
    %v256 = vsub.f32 %v254, %v255
    %v257 = vand.u32 %v256, 4294901760
    %258 = vmatpush.msra.mxu0 %v257
    %v259 = vand.u32 %v29, 4294901760
    %v260 = vsub.f32 %v29, %v259
    %v261 = vand.u32 %v260, 4294901760
    %v262 = vsub.f32 %v260, %v261
    %v263 = vand.u32 %v262, 4294901760
    %264 = vmatpush.msra.mxu0 %v263
    %v265 = vand.u32 %v28, 4294901760
    %v266 = vsub.f32 %v28, %v265
    %v267 = vand.u32 %v266, 4294901760
    %v268 = vsub.f32 %v266, %v267
    %v269 = vand.u32 %v268, 4294901760
    %270 = vmatpush.msra.mxu0 %v269
    %v271 = vand.u32 %v27, 4294901760
    %v272 = vsub.f32 %v27, %v271
    %v273 = vand.u32 %v272, 4294901760
    %v274 = vsub.f32 %v272, %v273
    %v275 = vand.u32 %v274, 4294901760
    %276 = vmatpush.msra.mxu0 %v275
    %v277 = vand.u32 %v26, 4294901760
    %v278 = vsub.f32 %v26, %v277
    %v279 = vand.u32 %v278, 4294901760
    %v280 = vsub.f32 %v278, %v279
    %v281 = vand.u32 %v280, 4294901760
    %282 = vmatpush.msra.mxu0 %v281
    %v283 = vand.u32 %v25, 4294901760
    %v284 = vsub.f32 %v25, %v283
    %v285 = vand.u32 %v284, 4294901760
    %v286 = vsub.f32 %v284, %v285
    %v287 = vand.u32 %v286, 4294901760
    %288 = vmatpush.msra.mxu0 %v287
    %v289 = vand.u32 %v24, 4294901760
    %v290 = vsub.f32 %v24, %v289
    %v291 = vand.u32 %v290, 4294901760
    %v292 = vsub.f32 %v290, %v291
    %v293 = vand.u32 %v292, 4294901760
    %294 = vmatpush.msra.mxu0 %v293
    %v295 = vand.u32 %v23, 4294901760
    %v296 = vsub.f32 %v23, %v295
    %v297 = vand.u32 %v296, 4294901760
    %v298 = vsub.f32 %v296, %v297
    %v299 = vand.u32 %v298, 4294901760
    %300 = vmatpush.msra.mxu0 %v299
    %v301 = vand.u32 %v148, 4294901760
    %302 = vmatmul.f32.gmra.mxu0 %v301
    %v303 = vpop.f32.mrf.mxu0
    %v304 = vadd.f32 %v203, %v303
    %305 = vdwg.mxu0
    %v306 = vand.u32 %v38, 4294901760
    %v307 = vsub.f32 %v38, %v306
    %308 = vmatpush.msra.mxu0 %v307
    %v309 = vand.u32 %v37, 4294901760
    %v310 = vsub.f32 %v37, %v309
    %311 = vmatpush.msra.mxu0 %v310
    %v312 = vand.u32 %v36, 4294901760
    %v313 = vsub.f32 %v36, %v312
    %314 = vmatpush.msra.mxu0 %v313
    %v315 = vand.u32 %v35, 4294901760
    %v316 = vsub.f32 %v35, %v315
    %317 = vmatpush.msra.mxu0 %v316
    %v318 = vand.u32 %v34, 4294901760
    %v319 = vsub.f32 %v34, %v318
    %320 = vmatpush.msra.mxu0 %v319
    %v321 = vand.u32 %v33, 4294901760
    %v322 = vsub.f32 %v33, %v321
    %323 = vmatpush.msra.mxu0 %v322
    %v324 = vand.u32 %v32, 4294901760
    %v325 = vsub.f32 %v32, %v324
    %326 = vmatpush.msra.mxu0 %v325
    %v327 = vand.u32 %v31, 4294901760
    %v328 = vsub.f32 %v31, %v327
    %329 = vmatpush.msra.mxu0 %v328
    %v330 = vand.u32 %v30, 4294901760
    %v331 = vsub.f32 %v30, %v330
    %332 = vmatpush.msra.mxu0 %v331
    %v333 = vand.u32 %v29, 4294901760
    %v334 = vsub.f32 %v29, %v333
    %335 = vmatpush.msra.mxu0 %v334
    %v336 = vand.u32 %v28, 4294901760
    %v337 = vsub.f32 %v28, %v336
    %338 = vmatpush.msra.mxu0 %v337
    %v339 = vand.u32 %v27, 4294901760
    %v340 = vsub.f32 %v27, %v339
    %341 = vmatpush.msra.mxu0 %v340
    %v342 = vand.u32 %v26, 4294901760
    %v343 = vsub.f32 %v26, %v342
    %344 = vmatpush.msra.mxu0 %v343
    %v345 = vand.u32 %v25, 4294901760
    %v346 = vsub.f32 %v25, %v345
    %347 = vmatpush.msra.mxu0 %v346
    %v348 = vand.u32 %v24, 4294901760
    %v349 = vsub.f32 %v24, %v348
    %350 = vmatpush.msra.mxu0 %v349
    %v351 = vand.u32 %v23, 4294901760
    %v352 = vsub.f32 %v23, %v351
    %353 = vmatpush.msra.mxu0 %v352
    %v354 = vand.u32 %v148, 4294901760
    %v355 = vsub.f32 %v148, %v354
    %356 = vmatmul.f32.gmra.mxu0 %v355
    %v357 = vpop.f32.mrf.mxu0
    %v358 = vadd.f32 %v304, %v357
    %359 = vdwg.mxu0
    %v360 = vand.u32 %v38, 4294901760
    %361 = vmatpush.msra.mxu0 %v360
    %v362 = vand.u32 %v37, 4294901760
    %363 = vmatpush.msra.mxu0 %v362
    %v364 = vand.u32 %v36, 4294901760
    %365 = vmatpush.msra.mxu0 %v364
    %v366 = vand.u32 %v35, 4294901760
    %367 = vmatpush.msra.mxu0 %v366
    %v368 = vand.u32 %v34, 4294901760
    %369 = vmatpush.msra.mxu0 %v368
    %v370 = vand.u32 %v33, 4294901760
    %371 = vmatpush.msra.mxu0 %v370
    %v372 = vand.u32 %v32, 4294901760
    %373 = vmatpush.msra.mxu0 %v372
    %v374 = vand.u32 %v31, 4294901760
    %375 = vmatpush.msra.mxu0 %v374
    %v376 = vand.u32 %v30, 4294901760
    %377 = vmatpush.msra.mxu0 %v376
    %v378 = vand.u32 %v29, 4294901760
    %379 = vmatpush.msra.mxu0 %v378
    %v380 = vand.u32 %v28, 4294901760
    %381 = vmatpush.msra.mxu0 %v380
    %v382 = vand.u32 %v27, 4294901760
    %383 = vmatpush.msra.mxu0 %v382
    %v384 = vand.u32 %v26, 4294901760
    %385 = vmatpush.msra.mxu0 %v384
    %v386 = vand.u32 %v25, 4294901760
    %387 = vmatpush.msra.mxu0 %v386
    %v388 = vand.u32 %v24, 4294901760
    %389 = vmatpush.msra.mxu0 %v388
    %v390 = vand.u32 %v23, 4294901760
    %391 = vmatpush.msra.mxu0 %v390
    %v392 = vand.u32 %v148, 4294901760
    %v393 = vsub.f32 %v148, %v392
    %v394 = vand.u32 %v393, 4294901760
    %395 = vmatmul.f32.gmra.mxu0 %v394
    %v396 = vpop.f32.mrf.mxu0
    %v397 = vadd.f32 %v358, %v396
    %398 = vdwg.mxu0
    %v399 = vand.u32 %v38, 4294901760
    %v400 = vsub.f32 %v38, %v399
    %v401 = vand.u32 %v400, 4294901760
    %402 = vmatpush.msra.mxu0 %v401
    %v403 = vand.u32 %v37, 4294901760
    %v404 = vsub.f32 %v37, %v403
    %v405 = vand.u32 %v404, 4294901760
    %406 = vmatpush.msra.mxu0 %v405
    %v407 = vand.u32 %v36, 4294901760
    %v408 = vsub.f32 %v36, %v407
    %v409 = vand.u32 %v408, 4294901760
    %410 = vmatpush.msra.mxu0 %v409
    %v411 = vand.u32 %v35, 4294901760
    %v412 = vsub.f32 %v35, %v411
    %v413 = vand.u32 %v412, 4294901760
    %414 = vmatpush.msra.mxu0 %v413
    %v415 = vand.u32 %v34, 4294901760
    %v416 = vsub.f32 %v34, %v415
    %v417 = vand.u32 %v416, 4294901760
    %418 = vmatpush.msra.mxu0 %v417
    %v419 = vand.u32 %v33, 4294901760
    %v420 = vsub.f32 %v33, %v419
    %v421 = vand.u32 %v420, 4294901760
    %422 = vmatpush.msra.mxu0 %v421
    %v423 = vand.u32 %v32, 4294901760
    %v424 = vsub.f32 %v32, %v423
    %v425 = vand.u32 %v424, 4294901760
    %426 = vmatpush.msra.mxu0 %v425
    %v427 = vand.u32 %v31, 4294901760
    %v428 = vsub.f32 %v31, %v427
    %v429 = vand.u32 %v428, 4294901760
    %430 = vmatpush.msra.mxu0 %v429
    %v431 = vand.u32 %v30, 4294901760
    %v432 = vsub.f32 %v30, %v431
    %v433 = vand.u32 %v432, 4294901760
    %434 = vmatpush.msra.mxu0 %v433
    %v435 = vand.u32 %v29, 4294901760
    %v436 = vsub.f32 %v29, %v435
    %v437 = vand.u32 %v436, 4294901760
    %438 = vmatpush.msra.mxu0 %v437
    %v439 = vand.u32 %v28, 4294901760
    %v440 = vsub.f32 %v28, %v439
    %v441 = vand.u32 %v440, 4294901760
    %442 = vmatpush.msra.mxu0 %v441
    %v443 = vand.u32 %v27, 4294901760
    %v444 = vsub.f32 %v27, %v443
    %v445 = vand.u32 %v444, 4294901760
    %446 = vmatpush.msra.mxu0 %v445
    %v447 = vand.u32 %v26, 4294901760
    %v448 = vsub.f32 %v26, %v447
    %v449 = vand.u32 %v448, 4294901760
    %450 = vmatpush.msra.mxu0 %v449
    %v451 = vand.u32 %v25, 4294901760
    %v452 = vsub.f32 %v25, %v451
    %v453 = vand.u32 %v452, 4294901760
    %454 = vmatpush.msra.mxu0 %v453
    %v455 = vand.u32 %v24, 4294901760
    %v456 = vsub.f32 %v24, %v455
    %v457 = vand.u32 %v456, 4294901760
    %458 = vmatpush.msra.mxu0 %v457
    %v459 = vand.u32 %v23, 4294901760
    %v460 = vsub.f32 %v23, %v459
    %v461 = vand.u32 %v460, 4294901760
    %462 = vmatpush.msra.mxu0 %v461
    %v463 = vand.u32 %v148, 4294901760
    %464 = vmatmul.f32.gmra.mxu0 %v463
    %v465 = vpop.f32.mrf.mxu0
    %v466 = vadd.f32 %v397, %v465
    %467 = vdwg.mxu0
    %v468 = vand.u32 %v38, 4294901760
    %469 = vmatpush.msra.mxu0 %v468
    %v470 = vand.u32 %v37, 4294901760
    %471 = vmatpush.msra.mxu0 %v470
    %v472 = vand.u32 %v36, 4294901760
    %473 = vmatpush.msra.mxu0 %v472
    %v474 = vand.u32 %v35, 4294901760
    %475 = vmatpush.msra.mxu0 %v474
    %v476 = vand.u32 %v34, 4294901760
    %477 = vmatpush.msra.mxu0 %v476
    %v478 = vand.u32 %v33, 4294901760
    %479 = vmatpush.msra.mxu0 %v478
    %v480 = vand.u32 %v32, 4294901760
    %481 = vmatpush.msra.mxu0 %v480
    %v482 = vand.u32 %v31, 4294901760
    %483 = vmatpush.msra.mxu0 %v482
    %v484 = vand.u32 %v30, 4294901760
    %485 = vmatpush.msra.mxu0 %v484
    %v486 = vand.u32 %v29, 4294901760
    %487 = vmatpush.msra.mxu0 %v486
    %v488 = vand.u32 %v28, 4294901760
    %489 = vmatpush.msra.mxu0 %v488
    %v490 = vand.u32 %v27, 4294901760
    %491 = vmatpush.msra.mxu0 %v490
    %v492 = vand.u32 %v26, 4294901760
    %493 = vmatpush.msra.mxu0 %v492
    %v494 = vand.u32 %v25, 4294901760
    %495 = vmatpush.msra.mxu0 %v494
    %v496 = vand.u32 %v24, 4294901760
    %497 = vmatpush.msra.mxu0 %v496
    %v498 = vand.u32 %v23, 4294901760
    %499 = vmatpush.msra.mxu0 %v498
    %v500 = vand.u32 %v148, 4294901760
    %501 = vmatmul.f32.gmra.mxu0 %v500
    %v502 = vpop.f32.mrf.mxu0
    %v503 = vadd.f32 %v466, %v502
    %504 = vdwg.mxu0
    %v505 = vand.u32 %v54, 4294901760
    %506 = vmatpush.msra.mxu0 %v505
    %v507 = vand.u32 %v53, 4294901760
    %508 = vmatpush.msra.mxu0 %v507
    %v509 = vand.u32 %v52, 4294901760
    %510 = vmatpush.msra.mxu0 %v509
    %v511 = vand.u32 %v51, 4294901760
    %512 = vmatpush.msra.mxu0 %v511
    %v513 = vand.u32 %v50, 4294901760
    %514 = vmatpush.msra.mxu0 %v513
    %v515 = vand.u32 %v49, 4294901760
    %516 = vmatpush.msra.mxu0 %v515
    %v517 = vand.u32 %v48, 4294901760
    %518 = vmatpush.msra.mxu0 %v517
    %v519 = vand.u32 %v47, 4294901760
    %520 = vmatpush.msra.mxu0 %v519
    %v521 = vand.u32 %v46, 4294901760
    %522 = vmatpush.msra.mxu0 %v521
    %v523 = vand.u32 %v45, 4294901760
    %524 = vmatpush.msra.mxu0 %v523
    %v525 = vand.u32 %v44, 4294901760
    %526 = vmatpush.msra.mxu0 %v525
    %v527 = vand.u32 %v43, 4294901760
    %528 = vmatpush.msra.mxu0 %v527
    %v529 = vand.u32 %v42, 4294901760
    %530 = vmatpush.msra.mxu0 %v529
    %v531 = vand.u32 %v41, 4294901760
    %532 = vmatpush.msra.mxu0 %v531
    %v533 = vand.u32 %v40, 4294901760
    %534 = vmatpush.msra.mxu0 %v533
    %v535 = vand.u32 %v39, 4294901760
    %536 = vmatpush.msra.mxu0 %v535
    %v537 = vand.u32 %v149, 4294901760
    %v538 = vsub.f32 %v149, %v537
    %v539 = vand.u32 %v538, 4294901760
    %v540 = vsub.f32 %v538, %v539
    %v541 = vand.u32 %v540, 4294901760
    %542 = vmatmul.f32.gmra.mxu0 %v541
    %v543 = vpop.f32.mrf.mxu0
    %v544 = vadd.f32 %v503, %v543
    %545 = vdwg.mxu0
    %v546 = vand.u32 %v54, 4294901760
    %v547 = vsub.f32 %v54, %v546
    %v548 = vand.u32 %v547, 4294901760
    %v549 = vsub.f32 %v547, %v548
    %v550 = vand.u32 %v549, 4294901760
    %551 = vmatpush.msra.mxu0 %v550
    %v552 = vand.u32 %v53, 4294901760
    %v553 = vsub.f32 %v53, %v552
    %v554 = vand.u32 %v553, 4294901760
    %v555 = vsub.f32 %v553, %v554
    %v556 = vand.u32 %v555, 4294901760
    %557 = vmatpush.msra.mxu0 %v556
    %v558 = vand.u32 %v52, 4294901760
    %v559 = vsub.f32 %v52, %v558
    %v560 = vand.u32 %v559, 4294901760
    %v561 = vsub.f32 %v559, %v560
    %v562 = vand.u32 %v561, 4294901760
    %563 = vmatpush.msra.mxu0 %v562
    %v564 = vand.u32 %v51, 4294901760
    %v565 = vsub.f32 %v51, %v564
    %v566 = vand.u32 %v565, 4294901760
    %v567 = vsub.f32 %v565, %v566
    %v568 = vand.u32 %v567, 4294901760
    %569 = vmatpush.msra.mxu0 %v568
    %v570 = vand.u32 %v50, 4294901760
    %v571 = vsub.f32 %v50, %v570
    %v572 = vand.u32 %v571, 4294901760
    %v573 = vsub.f32 %v571, %v572
    %v574 = vand.u32 %v573, 4294901760
    %575 = vmatpush.msra.mxu0 %v574
    %v576 = vand.u32 %v49, 4294901760
    %v577 = vsub.f32 %v49, %v576
    %v578 = vand.u32 %v577, 4294901760
    %v579 = vsub.f32 %v577, %v578
    %v580 = vand.u32 %v579, 4294901760
    %581 = vmatpush.msra.mxu0 %v580
    %v582 = vand.u32 %v48, 4294901760
    %v583 = vsub.f32 %v48, %v582
    %v584 = vand.u32 %v583, 4294901760
    %v585 = vsub.f32 %v583, %v584
    %v586 = vand.u32 %v585, 4294901760
    %587 = vmatpush.msra.mxu0 %v586
    %v588 = vand.u32 %v47, 4294901760
    %v589 = vsub.f32 %v47, %v588
    %v590 = vand.u32 %v589, 4294901760
    %v591 = vsub.f32 %v589, %v590
    %v592 = vand.u32 %v591, 4294901760
    %593 = vmatpush.msra.mxu0 %v592
    %v594 = vand.u32 %v46, 4294901760
    %v595 = vsub.f32 %v46, %v594
    %v596 = vand.u32 %v595, 4294901760
    %v597 = vsub.f32 %v595, %v596
    %v598 = vand.u32 %v597, 4294901760
    %599 = vmatpush.msra.mxu0 %v598
    %v600 = vand.u32 %v45, 4294901760
    %v601 = vsub.f32 %v45, %v600
    %v602 = vand.u32 %v601, 4294901760
    %v603 = vsub.f32 %v601, %v602
    %v604 = vand.u32 %v603, 4294901760
    %605 = vmatpush.msra.mxu0 %v604
    %v606 = vand.u32 %v44, 4294901760
    %v607 = vsub.f32 %v44, %v606
    %v608 = vand.u32 %v607, 4294901760
    %v609 = vsub.f32 %v607, %v608
    %v610 = vand.u32 %v609, 4294901760
    %611 = vmatpush.msra.mxu0 %v610
    %v612 = vand.u32 %v43, 4294901760
    %v613 = vsub.f32 %v43, %v612
    %v614 = vand.u32 %v613, 4294901760
    %v615 = vsub.f32 %v613, %v614
    %v616 = vand.u32 %v615, 4294901760
    %617 = vmatpush.msra.mxu0 %v616
    %v618 = vand.u32 %v42, 4294901760
    %v619 = vsub.f32 %v42, %v618
    %v620 = vand.u32 %v619, 4294901760
    %v621 = vsub.f32 %v619, %v620
    %v622 = vand.u32 %v621, 4294901760
    %623 = vmatpush.msra.mxu0 %v622
    %v624 = vand.u32 %v41, 4294901760
    %v625 = vsub.f32 %v41, %v624
    %v626 = vand.u32 %v625, 4294901760
    %v627 = vsub.f32 %v625, %v626
    %v628 = vand.u32 %v627, 4294901760
    %629 = vmatpush.msra.mxu0 %v628
    %v630 = vand.u32 %v40, 4294901760
    %v631 = vsub.f32 %v40, %v630
    %v632 = vand.u32 %v631, 4294901760
    %v633 = vsub.f32 %v631, %v632
    %v634 = vand.u32 %v633, 4294901760
    %635 = vmatpush.msra.mxu0 %v634
    %v636 = vand.u32 %v39, 4294901760
    %v637 = vsub.f32 %v39, %v636
    %v638 = vand.u32 %v637, 4294901760
    %v639 = vsub.f32 %v637, %v638
    %v640 = vand.u32 %v639, 4294901760
    %641 = vmatpush.msra.mxu0 %v640
    %v642 = vand.u32 %v149, 4294901760
    %643 = vmatmul.f32.gmra.mxu0 %v642
    %v644 = vpop.f32.mrf.mxu0
    %v645 = vadd.f32 %v544, %v644
    %646 = vdwg.mxu0
    %v647 = vand.u32 %v54, 4294901760
    %v648 = vsub.f32 %v54, %v647
    %649 = vmatpush.msra.mxu0 %v648
    %v650 = vand.u32 %v53, 4294901760
    %v651 = vsub.f32 %v53, %v650
    %652 = vmatpush.msra.mxu0 %v651
    %v653 = vand.u32 %v52, 4294901760
    %v654 = vsub.f32 %v52, %v653
    %655 = vmatpush.msra.mxu0 %v654
    %v656 = vand.u32 %v51, 4294901760
    %v657 = vsub.f32 %v51, %v656
    %658 = vmatpush.msra.mxu0 %v657
    %v659 = vand.u32 %v50, 4294901760
    %v660 = vsub.f32 %v50, %v659
    %661 = vmatpush.msra.mxu0 %v660
    %v662 = vand.u32 %v49, 4294901760
    %v663 = vsub.f32 %v49, %v662
    %664 = vmatpush.msra.mxu0 %v663
    %v665 = vand.u32 %v48, 4294901760
    %v666 = vsub.f32 %v48, %v665
    %667 = vmatpush.msra.mxu0 %v666
    %v668 = vand.u32 %v47, 4294901760
    %v669 = vsub.f32 %v47, %v668
    %670 = vmatpush.msra.mxu0 %v669
    %v671 = vand.u32 %v46, 4294901760
    %v672 = vsub.f32 %v46, %v671
    %673 = vmatpush.msra.mxu0 %v672
    %v674 = vand.u32 %v45, 4294901760
    %v675 = vsub.f32 %v45, %v674
    %676 = vmatpush.msra.mxu0 %v675
    %v677 = vand.u32 %v44, 4294901760
    %v678 = vsub.f32 %v44, %v677
    %679 = vmatpush.msra.mxu0 %v678
    %v680 = vand.u32 %v43, 4294901760
    %v681 = vsub.f32 %v43, %v680
    %682 = vmatpush.msra.mxu0 %v681
    %v683 = vand.u32 %v42, 4294901760
    %v684 = vsub.f32 %v42, %v683
    %685 = vmatpush.msra.mxu0 %v684
    %v686 = vand.u32 %v41, 4294901760
    %v687 = vsub.f32 %v41, %v686
    %688 = vmatpush.msra.mxu0 %v687
    %v689 = vand.u32 %v40, 4294901760
    %v690 = vsub.f32 %v40, %v689
    %691 = vmatpush.msra.mxu0 %v690
    %v692 = vand.u32 %v39, 4294901760
    %v693 = vsub.f32 %v39, %v692
    %694 = vmatpush.msra.mxu0 %v693
    %v695 = vand.u32 %v149, 4294901760
    %v696 = vsub.f32 %v149, %v695
    %697 = vmatmul.f32.gmra.mxu0 %v696
    %v698 = vpop.f32.mrf.mxu0
    %v699 = vadd.f32 %v645, %v698
    %700 = vdwg.mxu0
    %v701 = vand.u32 %v54, 4294901760
    %702 = vmatpush.msra.mxu0 %v701
    %v703 = vand.u32 %v53, 4294901760
    %704 = vmatpush.msra.mxu0 %v703
    %v705 = vand.u32 %v52, 4294901760
    %706 = vmatpush.msra.mxu0 %v705
    %v707 = vand.u32 %v51, 4294901760
    %708 = vmatpush.msra.mxu0 %v707
    %v709 = vand.u32 %v50, 4294901760
    %710 = vmatpush.msra.mxu0 %v709
    %v711 = vand.u32 %v49, 4294901760
    %712 = vmatpush.msra.mxu0 %v711
    %v713 = vand.u32 %v48, 4294901760
    %714 = vmatpush.msra.mxu0 %v713
    %v715 = vand.u32 %v47, 4294901760
    %716 = vmatpush.msra.mxu0 %v715
    %v717 = vand.u32 %v46, 4294901760
    %718 = vmatpush.msra.mxu0 %v717
    %v719 = vand.u32 %v45, 4294901760
    %720 = vmatpush.msra.mxu0 %v719
    %v721 = vand.u32 %v44, 4294901760
    %722 = vmatpush.msra.mxu0 %v721
    %v723 = vand.u32 %v43, 4294901760
    %724 = vmatpush.msra.mxu0 %v723
    %v725 = vand.u32 %v42, 4294901760
    %726 = vmatpush.msra.mxu0 %v725
    %v727 = vand.u32 %v41, 4294901760
    %728 = vmatpush.msra.mxu0 %v727
    %v729 = vand.u32 %v40, 4294901760
    %730 = vmatpush.msra.mxu0 %v729
    %v731 = vand.u32 %v39, 4294901760
    %732 = vmatpush.msra.mxu0 %v731
    %v733 = vand.u32 %v149, 4294901760
    %v734 = vsub.f32 %v149, %v733
    %v735 = vand.u32 %v734, 4294901760
    %736 = vmatmul.f32.gmra.mxu0 %v735
    %v737 = vpop.f32.mrf.mxu0
    %v738 = vadd.f32 %v699, %v737
    %739 = vdwg.mxu0
    %v740 = vand.u32 %v54, 4294901760
    %v741 = vsub.f32 %v54, %v740
    %v742 = vand.u32 %v741, 4294901760
    %743 = vmatpush.msra.mxu0 %v742
    %v744 = vand.u32 %v53, 4294901760
    %v745 = vsub.f32 %v53, %v744
    %v746 = vand.u32 %v745, 4294901760
    %747 = vmatpush.msra.mxu0 %v746
    %v748 = vand.u32 %v52, 4294901760
    %v749 = vsub.f32 %v52, %v748
    %v750 = vand.u32 %v749, 4294901760
    %751 = vmatpush.msra.mxu0 %v750
    %v752 = vand.u32 %v51, 4294901760
    %v753 = vsub.f32 %v51, %v752
    %v754 = vand.u32 %v753, 4294901760
    %755 = vmatpush.msra.mxu0 %v754
    %v756 = vand.u32 %v50, 4294901760
    %v757 = vsub.f32 %v50, %v756
    %v758 = vand.u32 %v757, 4294901760
    %759 = vmatpush.msra.mxu0 %v758
    %v760 = vand.u32 %v49, 4294901760
    %v761 = vsub.f32 %v49, %v760
    %v762 = vand.u32 %v761, 4294901760
    %763 = vmatpush.msra.mxu0 %v762
    %v764 = vand.u32 %v48, 4294901760
    %v765 = vsub.f32 %v48, %v764
    %v766 = vand.u32 %v765, 4294901760
    %767 = vmatpush.msra.mxu0 %v766
    %v768 = vand.u32 %v47, 4294901760
    %v769 = vsub.f32 %v47, %v768
    %v770 = vand.u32 %v769, 4294901760
    %771 = vmatpush.msra.mxu0 %v770
    %v772 = vand.u32 %v46, 4294901760
    %v773 = vsub.f32 %v46, %v772
    %v774 = vand.u32 %v773, 4294901760
    %775 = vmatpush.msra.mxu0 %v774
    %v776 = vand.u32 %v45, 4294901760
    %v777 = vsub.f32 %v45, %v776
    %v778 = vand.u32 %v777, 4294901760
    %779 = vmatpush.msra.mxu0 %v778
    %v780 = vand.u32 %v44, 4294901760
    %v781 = vsub.f32 %v44, %v780
    %v782 = vand.u32 %v781, 4294901760
    %783 = vmatpush.msra.mxu0 %v782
    %v784 = vand.u32 %v43, 4294901760
    %v785 = vsub.f32 %v43, %v784
    %v786 = vand.u32 %v785, 4294901760
    %787 = vmatpush.msra.mxu0 %v786
    %v788 = vand.u32 %v42, 4294901760
    %v789 = vsub.f32 %v42, %v788
    %v790 = vand.u32 %v789, 4294901760
    %791 = vmatpush.msra.mxu0 %v790
    %v792 = vand.u32 %v41, 4294901760
    %v793 = vsub.f32 %v41, %v792
    %v794 = vand.u32 %v793, 4294901760
    %795 = vmatpush.msra.mxu0 %v794
    %v796 = vand.u32 %v40, 4294901760
    %v797 = vsub.f32 %v40, %v796
    %v798 = vand.u32 %v797, 4294901760
    %799 = vmatpush.msra.mxu0 %v798
    %v800 = vand.u32 %v39, 4294901760
    %v801 = vsub.f32 %v39, %v800
    %v802 = vand.u32 %v801, 4294901760
    %803 = vmatpush.msra.mxu0 %v802
    %v804 = vand.u32 %v149, 4294901760
    %805 = vmatmul.f32.gmra.mxu0 %v804
    %v806 = vpop.f32.mrf.mxu0
    %v807 = vadd.f32 %v738, %v806
    %808 = vdwg.mxu0
    %v809 = vand.u32 %v54, 4294901760
    %810 = vmatpush.msra.mxu0 %v809
    %v811 = vand.u32 %v53, 4294901760
    %812 = vmatpush.msra.mxu0 %v811
    %v813 = vand.u32 %v52, 4294901760
    %814 = vmatpush.msra.mxu0 %v813
    %v815 = vand.u32 %v51, 4294901760
    %816 = vmatpush.msra.mxu0 %v815
    %v817 = vand.u32 %v50, 4294901760
    %818 = vmatpush.msra.mxu0 %v817
    %v819 = vand.u32 %v49, 4294901760
    %820 = vmatpush.msra.mxu0 %v819
    %v821 = vand.u32 %v48, 4294901760
    %822 = vmatpush.msra.mxu0 %v821
    %v823 = vand.u32 %v47, 4294901760
    %824 = vmatpush.msra.mxu0 %v823
    %v825 = vand.u32 %v46, 4294901760
    %826 = vmatpush.msra.mxu0 %v825
    %v827 = vand.u32 %v45, 4294901760
    %828 = vmatpush.msra.mxu0 %v827
    %v829 = vand.u32 %v44, 4294901760
    %830 = vmatpush.msra.mxu0 %v829
    %v831 = vand.u32 %v43, 4294901760
    %832 = vmatpush.msra.mxu0 %v831
    %v833 = vand.u32 %v42, 4294901760
    %834 = vmatpush.msra.mxu0 %v833
    %v835 = vand.u32 %v41, 4294901760
    %836 = vmatpush.msra.mxu0 %v835
    %v837 = vand.u32 %v40, 4294901760
    %838 = vmatpush.msra.mxu0 %v837
    %v839 = vand.u32 %v39, 4294901760
    %840 = vmatpush.msra.mxu0 %v839
    %v841 = vand.u32 %v149, 4294901760
    %842 = vmatmul.f32.gmra.mxu0 %v841
    %v843 = vpop.f32.mrf.mxu0
    %v844 = vadd.f32 %v807, %v843
    %845 = vdwg.mxu0
    %v846 = vand.u32 %v70, 4294901760
    %847 = vmatpush.msra.mxu0 %v846
    %v848 = vand.u32 %v69, 4294901760
    %849 = vmatpush.msra.mxu0 %v848
    %v850 = vand.u32 %v68, 4294901760
    %851 = vmatpush.msra.mxu0 %v850
    %v852 = vand.u32 %v67, 4294901760
    %853 = vmatpush.msra.mxu0 %v852
    %v854 = vand.u32 %v66, 4294901760
    %855 = vmatpush.msra.mxu0 %v854
    %v856 = vand.u32 %v65, 4294901760
    %857 = vmatpush.msra.mxu0 %v856
    %v858 = vand.u32 %v64, 4294901760
    %859 = vmatpush.msra.mxu0 %v858
    %v860 = vand.u32 %v63, 4294901760
    %861 = vmatpush.msra.mxu0 %v860
    %v862 = vand.u32 %v62, 4294901760
    %863 = vmatpush.msra.mxu0 %v862
    %v864 = vand.u32 %v61, 4294901760
    %865 = vmatpush.msra.mxu0 %v864
    %v866 = vand.u32 %v60, 4294901760
    %867 = vmatpush.msra.mxu0 %v866
    %v868 = vand.u32 %v59, 4294901760
    %869 = vmatpush.msra.mxu0 %v868
    %v870 = vand.u32 %v58, 4294901760
    %871 = vmatpush.msra.mxu0 %v870
    %v872 = vand.u32 %v57, 4294901760
    %873 = vmatpush.msra.mxu0 %v872
    %v874 = vand.u32 %v56, 4294901760
    %875 = vmatpush.msra.mxu0 %v874
    %v876 = vand.u32 %v55, 4294901760
    %877 = vmatpush.msra.mxu0 %v876
    %v878 = vand.u32 %v150, 4294901760
    %v879 = vsub.f32 %v150, %v878
    %v880 = vand.u32 %v879, 4294901760
    %v881 = vsub.f32 %v879, %v880
    %v882 = vand.u32 %v881, 4294901760
    %883 = vmatmul.f32.gmra.mxu0 %v882
    %v884 = vpop.f32.mrf.mxu0
    %v885 = vadd.f32 %v844, %v884
    %886 = vdwg.mxu0
    %v887 = vand.u32 %v70, 4294901760
    %v888 = vsub.f32 %v70, %v887
    %v889 = vand.u32 %v888, 4294901760
    %v890 = vsub.f32 %v888, %v889
    %v891 = vand.u32 %v890, 4294901760
    %892 = vmatpush.msra.mxu0 %v891
    %v893 = vand.u32 %v69, 4294901760
    %v894 = vsub.f32 %v69, %v893
    %v895 = vand.u32 %v894, 4294901760
    %v896 = vsub.f32 %v894, %v895
    %v897 = vand.u32 %v896, 4294901760
    %898 = vmatpush.msra.mxu0 %v897
    %v899 = vand.u32 %v68, 4294901760
    %v900 = vsub.f32 %v68, %v899
    %v901 = vand.u32 %v900, 4294901760
    %v902 = vsub.f32 %v900, %v901
    %v903 = vand.u32 %v902, 4294901760
    %904 = vmatpush.msra.mxu0 %v903
    %v905 = vand.u32 %v67, 4294901760
    %v906 = vsub.f32 %v67, %v905
    %v907 = vand.u32 %v906, 4294901760
    %v908 = vsub.f32 %v906, %v907
    %v909 = vand.u32 %v908, 4294901760
    %910 = vmatpush.msra.mxu0 %v909
    %v911 = vand.u32 %v66, 4294901760
    %v912 = vsub.f32 %v66, %v911
    %v913 = vand.u32 %v912, 4294901760
    %v914 = vsub.f32 %v912, %v913
    %v915 = vand.u32 %v914, 4294901760
    %916 = vmatpush.msra.mxu0 %v915
    %v917 = vand.u32 %v65, 4294901760
    %v918 = vsub.f32 %v65, %v917
    %v919 = vand.u32 %v918, 4294901760
    %v920 = vsub.f32 %v918, %v919
    %v921 = vand.u32 %v920, 4294901760
    %922 = vmatpush.msra.mxu0 %v921
    %v923 = vand.u32 %v64, 4294901760
    %v924 = vsub.f32 %v64, %v923
    %v925 = vand.u32 %v924, 4294901760
    %v926 = vsub.f32 %v924, %v925
    %v927 = vand.u32 %v926, 4294901760
    %928 = vmatpush.msra.mxu0 %v927
    %v929 = vand.u32 %v63, 4294901760
    %v930 = vsub.f32 %v63, %v929
    %v931 = vand.u32 %v930, 4294901760
    %v932 = vsub.f32 %v930, %v931
    %v933 = vand.u32 %v932, 4294901760
    %934 = vmatpush.msra.mxu0 %v933
    %v935 = vand.u32 %v62, 4294901760
    %v936 = vsub.f32 %v62, %v935
    %v937 = vand.u32 %v936, 4294901760
    %v938 = vsub.f32 %v936, %v937
    %v939 = vand.u32 %v938, 4294901760
    %940 = vmatpush.msra.mxu0 %v939
    %v941 = vand.u32 %v61, 4294901760
    %v942 = vsub.f32 %v61, %v941
    %v943 = vand.u32 %v942, 4294901760
    %v944 = vsub.f32 %v942, %v943
    %v945 = vand.u32 %v944, 4294901760
    %946 = vmatpush.msra.mxu0 %v945
    %v947 = vand.u32 %v60, 4294901760
    %v948 = vsub.f32 %v60, %v947
    %v949 = vand.u32 %v948, 4294901760
    %v950 = vsub.f32 %v948, %v949
    %v951 = vand.u32 %v950, 4294901760
    %952 = vmatpush.msra.mxu0 %v951
    %v953 = vand.u32 %v59, 4294901760
    %v954 = vsub.f32 %v59, %v953
    %v955 = vand.u32 %v954, 4294901760
    %v956 = vsub.f32 %v954, %v955
    %v957 = vand.u32 %v956, 4294901760
    %958 = vmatpush.msra.mxu0 %v957
    %v959 = vand.u32 %v58, 4294901760
    %v960 = vsub.f32 %v58, %v959
    %v961 = vand.u32 %v960, 4294901760
    %v962 = vsub.f32 %v960, %v961
    %v963 = vand.u32 %v962, 4294901760
    %964 = vmatpush.msra.mxu0 %v963
    %v965 = vand.u32 %v57, 4294901760
    %v966 = vsub.f32 %v57, %v965
    %v967 = vand.u32 %v966, 4294901760
    %v968 = vsub.f32 %v966, %v967
    %v969 = vand.u32 %v968, 4294901760
    %970 = vmatpush.msra.mxu0 %v969
    %v971 = vand.u32 %v56, 4294901760
    %v972 = vsub.f32 %v56, %v971
    %v973 = vand.u32 %v972, 4294901760
    %v974 = vsub.f32 %v972, %v973
    %v975 = vand.u32 %v974, 4294901760
    %976 = vmatpush.msra.mxu0 %v975
    %v977 = vand.u32 %v55, 4294901760
    %v978 = vsub.f32 %v55, %v977
    %v979 = vand.u32 %v978, 4294901760
    %v980 = vsub.f32 %v978, %v979
    %v981 = vand.u32 %v980, 4294901760
    %982 = vmatpush.msra.mxu0 %v981
    %v983 = vand.u32 %v150, 4294901760
    %984 = vmatmul.f32.gmra.mxu0 %v983
    %v985 = vpop.f32.mrf.mxu0
    %v986 = vadd.f32 %v885, %v985
    %987 = vdwg.mxu0
    %v988 = vand.u32 %v70, 4294901760
    %v989 = vsub.f32 %v70, %v988
    %990 = vmatpush.msra.mxu0 %v989
    %v991 = vand.u32 %v69, 4294901760
    %v992 = vsub.f32 %v69, %v991
    %993 = vmatpush.msra.mxu0 %v992
    %v994 = vand.u32 %v68, 4294901760
    %v995 = vsub.f32 %v68, %v994
    %996 = vmatpush.msra.mxu0 %v995
    %v997 = vand.u32 %v67, 4294901760
    %v998 = vsub.f32 %v67, %v997
    %999 = vmatpush.msra.mxu0 %v998
    %v1000 = vand.u32 %v66, 4294901760
    %v1001 = vsub.f32 %v66, %v1000
    %1002 = vmatpush.msra.mxu0 %v1001
    %v1003 = vand.u32 %v65, 4294901760
    %v1004 = vsub.f32 %v65, %v1003
    %1005 = vmatpush.msra.mxu0 %v1004
    %v1006 = vand.u32 %v64, 4294901760
    %v1007 = vsub.f32 %v64, %v1006
    %1008 = vmatpush.msra.mxu0 %v1007
    %v1009 = vand.u32 %v63, 4294901760
    %v1010 = vsub.f32 %v63, %v1009
    %1011 = vmatpush.msra.mxu0 %v1010
    %v1012 = vand.u32 %v62, 4294901760
    %v1013 = vsub.f32 %v62, %v1012
    %1014 = vmatpush.msra.mxu0 %v1013
    %v1015 = vand.u32 %v61, 4294901760
    %v1016 = vsub.f32 %v61, %v1015
    %1017 = vmatpush.msra.mxu0 %v1016
    %v1018 = vand.u32 %v60, 4294901760
    %v1019 = vsub.f32 %v60, %v1018
    %1020 = vmatpush.msra.mxu0 %v1019
    %v1021 = vand.u32 %v59, 4294901760
    %v1022 = vsub.f32 %v59, %v1021
    %1023 = vmatpush.msra.mxu0 %v1022
    %v1024 = vand.u32 %v58, 4294901760
    %v1025 = vsub.f32 %v58, %v1024
    %1026 = vmatpush.msra.mxu0 %v1025
    %v1027 = vand.u32 %v57, 4294901760
    %v1028 = vsub.f32 %v57, %v1027
    %1029 = vmatpush.msra.mxu0 %v1028
    %v1030 = vand.u32 %v56, 4294901760
    %v1031 = vsub.f32 %v56, %v1030
    %1032 = vmatpush.msra.mxu0 %v1031
    %v1033 = vand.u32 %v55, 4294901760
    %v1034 = vsub.f32 %v55, %v1033
    %1035 = vmatpush.msra.mxu0 %v1034
    %v1036 = vand.u32 %v150, 4294901760
    %v1037 = vsub.f32 %v150, %v1036
    %1038 = vmatmul.f32.gmra.mxu0 %v1037
    %v1039 = vpop.f32.mrf.mxu0
    %v1040 = vadd.f32 %v986, %v1039
    %1041 = vdwg.mxu0
    %v1042 = vand.u32 %v70, 4294901760
    %1043 = vmatpush.msra.mxu0 %v1042
    %v1044 = vand.u32 %v69, 4294901760
    %1045 = vmatpush.msra.mxu0 %v1044
    %v1046 = vand.u32 %v68, 4294901760
    %1047 = vmatpush.msra.mxu0 %v1046
    %v1048 = vand.u32 %v67, 4294901760
    %1049 = vmatpush.msra.mxu0 %v1048
    %v1050 = vand.u32 %v66, 4294901760
    %1051 = vmatpush.msra.mxu0 %v1050
    %v1052 = vand.u32 %v65, 4294901760
    %1053 = vmatpush.msra.mxu0 %v1052
    %v1054 = vand.u32 %v64, 4294901760
    %1055 = vmatpush.msra.mxu0 %v1054
    %v1056 = vand.u32 %v63, 4294901760
    %1057 = vmatpush.msra.mxu0 %v1056
    %v1058 = vand.u32 %v62, 4294901760
    %1059 = vmatpush.msra.mxu0 %v1058
    %v1060 = vand.u32 %v61, 4294901760
    %1061 = vmatpush.msra.mxu0 %v1060
    %v1062 = vand.u32 %v60, 4294901760
    %1063 = vmatpush.msra.mxu0 %v1062
    %v1064 = vand.u32 %v59, 4294901760
    %1065 = vmatpush.msra.mxu0 %v1064
    %v1066 = vand.u32 %v58, 4294901760
    %1067 = vmatpush.msra.mxu0 %v1066
    %v1068 = vand.u32 %v57, 4294901760
    %1069 = vmatpush.msra.mxu0 %v1068
    %v1070 = vand.u32 %v56, 4294901760
    %1071 = vmatpush.msra.mxu0 %v1070
    %v1072 = vand.u32 %v55, 4294901760
    %1073 = vmatpush.msra.mxu0 %v1072
    %v1074 = vand.u32 %v150, 4294901760
    %v1075 = vsub.f32 %v150, %v1074
    %v1076 = vand.u32 %v1075, 4294901760
    %1077 = vmatmul.f32.gmra.mxu0 %v1076
    %v1078 = vpop.f32.mrf.mxu0
    %v1079 = vadd.f32 %v1040, %v1078
    %1080 = vdwg.mxu0
    %v1081 = vand.u32 %v70, 4294901760
    %v1082 = vsub.f32 %v70, %v1081
    %v1083 = vand.u32 %v1082, 4294901760
    %1084 = vmatpush.msra.mxu0 %v1083
    %v1085 = vand.u32 %v69, 4294901760
    %v1086 = vsub.f32 %v69, %v1085
    %v1087 = vand.u32 %v1086, 4294901760
    %1088 = vmatpush.msra.mxu0 %v1087
    %v1089 = vand.u32 %v68, 4294901760
    %v1090 = vsub.f32 %v68, %v1089
    %v1091 = vand.u32 %v1090, 4294901760
    %1092 = vmatpush.msra.mxu0 %v1091
    %v1093 = vand.u32 %v67, 4294901760
    %v1094 = vsub.f32 %v67, %v1093
    %v1095 = vand.u32 %v1094, 4294901760
    %1096 = vmatpush.msra.mxu0 %v1095
    %v1097 = vand.u32 %v66, 4294901760
    %v1098 = vsub.f32 %v66, %v1097
    %v1099 = vand.u32 %v1098, 4294901760
    %1100 = vmatpush.msra.mxu0 %v1099
    %v1101 = vand.u32 %v65, 4294901760
    %v1102 = vsub.f32 %v65, %v1101
    %v1103 = vand.u32 %v1102, 4294901760
    %1104 = vmatpush.msra.mxu0 %v1103
    %v1105 = vand.u32 %v64, 4294901760
    %v1106 = vsub.f32 %v64, %v1105
    %v1107 = vand.u32 %v1106, 4294901760
    %1108 = vmatpush.msra.mxu0 %v1107
    %v1109 = vand.u32 %v63, 4294901760
    %v1110 = vsub.f32 %v63, %v1109
    %v1111 = vand.u32 %v1110, 4294901760
    %1112 = vmatpush.msra.mxu0 %v1111
    %v1113 = vand.u32 %v62, 4294901760
    %v1114 = vsub.f32 %v62, %v1113
    %v1115 = vand.u32 %v1114, 4294901760
    %1116 = vmatpush.msra.mxu0 %v1115
    %v1117 = vand.u32 %v61, 4294901760
    %v1118 = vsub.f32 %v61, %v1117
    %v1119 = vand.u32 %v1118, 4294901760
    %1120 = vmatpush.msra.mxu0 %v1119
    %v1121 = vand.u32 %v60, 4294901760
    %v1122 = vsub.f32 %v60, %v1121
    %v1123 = vand.u32 %v1122, 4294901760
    %1124 = vmatpush.msra.mxu0 %v1123
    %v1125 = vand.u32 %v59, 4294901760
    %v1126 = vsub.f32 %v59, %v1125
    %v1127 = vand.u32 %v1126, 4294901760
    %1128 = vmatpush.msra.mxu0 %v1127
    %v1129 = vand.u32 %v58, 4294901760
    %v1130 = vsub.f32 %v58, %v1129
    %v1131 = vand.u32 %v1130, 4294901760
    %1132 = vmatpush.msra.mxu0 %v1131
    %v1133 = vand.u32 %v57, 4294901760
    %v1134 = vsub.f32 %v57, %v1133
    %v1135 = vand.u32 %v1134, 4294901760
    %1136 = vmatpush.msra.mxu0 %v1135
    %v1137 = vand.u32 %v56, 4294901760
    %v1138 = vsub.f32 %v56, %v1137
    %v1139 = vand.u32 %v1138, 4294901760
    %1140 = vmatpush.msra.mxu0 %v1139
    %v1141 = vand.u32 %v55, 4294901760
    %v1142 = vsub.f32 %v55, %v1141
    %v1143 = vand.u32 %v1142, 4294901760
    %1144 = vmatpush.msra.mxu0 %v1143
    %v1145 = vand.u32 %v150, 4294901760
    %1146 = vmatmul.f32.gmra.mxu0 %v1145
    %v1147 = vpop.f32.mrf.mxu0
    %v1148 = vadd.f32 %v1079, %v1147
    %1149 = vdwg.mxu0
    %v1150 = vand.u32 %v70, 4294901760
    %1151 = vmatpush.msra.mxu0 %v1150
    %v1152 = vand.u32 %v69, 4294901760
    %1153 = vmatpush.msra.mxu0 %v1152
    %v1154 = vand.u32 %v68, 4294901760
    %1155 = vmatpush.msra.mxu0 %v1154
    %v1156 = vand.u32 %v67, 4294901760
    %1157 = vmatpush.msra.mxu0 %v1156
    %v1158 = vand.u32 %v66, 4294901760
    %1159 = vmatpush.msra.mxu0 %v1158
    %v1160 = vand.u32 %v65, 4294901760
    %1161 = vmatpush.msra.mxu0 %v1160
    %v1162 = vand.u32 %v64, 4294901760
    %1163 = vmatpush.msra.mxu0 %v1162
    %v1164 = vand.u32 %v63, 4294901760
    %1165 = vmatpush.msra.mxu0 %v1164
    %v1166 = vand.u32 %v62, 4294901760
    %1167 = vmatpush.msra.mxu0 %v1166
    %v1168 = vand.u32 %v61, 4294901760
    %1169 = vmatpush.msra.mxu0 %v1168
    %v1170 = vand.u32 %v60, 4294901760
    %1171 = vmatpush.msra.mxu0 %v1170
    %v1172 = vand.u32 %v59, 4294901760
    %1173 = vmatpush.msra.mxu0 %v1172
    %v1174 = vand.u32 %v58, 4294901760
    %1175 = vmatpush.msra.mxu0 %v1174
    %v1176 = vand.u32 %v57, 4294901760
    %1177 = vmatpush.msra.mxu0 %v1176
    %v1178 = vand.u32 %v56, 4294901760
    %1179 = vmatpush.msra.mxu0 %v1178
    %v1180 = vand.u32 %v55, 4294901760
    %1181 = vmatpush.msra.mxu0 %v1180
    %v1182 = vand.u32 %v150, 4294901760
    %1183 = vmatmul.f32.gmra.mxu0 %v1182
    %v1184 = vpop.f32.mrf.mxu0
    %v1185 = vadd.f32 %v1148, %v1184
    %1186 = vdwg.mxu0
    %v1187 = vand.u32 %v86, 4294901760
    %1188 = vmatpush.msra.mxu0 %v1187
    %v1189 = vand.u32 %v85, 4294901760
    %1190 = vmatpush.msra.mxu0 %v1189
    %v1191 = vand.u32 %v84, 4294901760
    %1192 = vmatpush.msra.mxu0 %v1191
    %v1193 = vand.u32 %v83, 4294901760
    %1194 = vmatpush.msra.mxu0 %v1193
    %v1195 = vand.u32 %v82, 4294901760
    %1196 = vmatpush.msra.mxu0 %v1195
    %v1197 = vand.u32 %v81, 4294901760
    %1198 = vmatpush.msra.mxu0 %v1197
    %v1199 = vand.u32 %v80, 4294901760
    %1200 = vmatpush.msra.mxu0 %v1199
    %v1201 = vand.u32 %v79, 4294901760
    %1202 = vmatpush.msra.mxu0 %v1201
    %v1203 = vand.u32 %v78, 4294901760
    %1204 = vmatpush.msra.mxu0 %v1203
    %v1205 = vand.u32 %v77, 4294901760
    %1206 = vmatpush.msra.mxu0 %v1205
    %v1207 = vand.u32 %v76, 4294901760
    %1208 = vmatpush.msra.mxu0 %v1207
    %v1209 = vand.u32 %v75, 4294901760
    %1210 = vmatpush.msra.mxu0 %v1209
    %v1211 = vand.u32 %v74, 4294901760
    %1212 = vmatpush.msra.mxu0 %v1211
    %v1213 = vand.u32 %v73, 4294901760
    %1214 = vmatpush.msra.mxu0 %v1213
    %v1215 = vand.u32 %v72, 4294901760
    %1216 = vmatpush.msra.mxu0 %v1215
    %v1217 = vand.u32 %v71, 4294901760
    %1218 = vmatpush.msra.mxu0 %v1217
    %v1219 = vand.u32 %v151, 4294901760
    %v1220 = vsub.f32 %v151, %v1219
    %v1221 = vand.u32 %v1220, 4294901760
    %v1222 = vsub.f32 %v1220, %v1221
    %v1223 = vand.u32 %v1222, 4294901760
    %1224 = vmatmul.f32.gmra.mxu0 %v1223
    %v1225 = vpop.f32.mrf.mxu0
    %v1226 = vadd.f32 %v1185, %v1225
    %1227 = vdwg.mxu0
    %v1228 = vand.u32 %v86, 4294901760
    %v1229 = vsub.f32 %v86, %v1228
    %v1230 = vand.u32 %v1229, 4294901760
    %v1231 = vsub.f32 %v1229, %v1230
    %v1232 = vand.u32 %v1231, 4294901760
    %1233 = vmatpush.msra.mxu0 %v1232
    %v1234 = vand.u32 %v85, 4294901760
    %v1235 = vsub.f32 %v85, %v1234
    %v1236 = vand.u32 %v1235, 4294901760
    %v1237 = vsub.f32 %v1235, %v1236
    %v1238 = vand.u32 %v1237, 4294901760
    %1239 = vmatpush.msra.mxu0 %v1238
    %v1240 = vand.u32 %v84, 4294901760
    %v1241 = vsub.f32 %v84, %v1240
    %v1242 = vand.u32 %v1241, 4294901760
    %v1243 = vsub.f32 %v1241, %v1242
    %v1244 = vand.u32 %v1243, 4294901760
    %1245 = vmatpush.msra.mxu0 %v1244
    %v1246 = vand.u32 %v83, 4294901760
    %v1247 = vsub.f32 %v83, %v1246
    %v1248 = vand.u32 %v1247, 4294901760
    %v1249 = vsub.f32 %v1247, %v1248
    %v1250 = vand.u32 %v1249, 4294901760
    %1251 = vmatpush.msra.mxu0 %v1250
    %v1252 = vand.u32 %v82, 4294901760
    %v1253 = vsub.f32 %v82, %v1252
    %v1254 = vand.u32 %v1253, 4294901760
    %v1255 = vsub.f32 %v1253, %v1254
    %v1256 = vand.u32 %v1255, 4294901760
    %1257 = vmatpush.msra.mxu0 %v1256
    %v1258 = vand.u32 %v81, 4294901760
    %v1259 = vsub.f32 %v81, %v1258
    %v1260 = vand.u32 %v1259, 4294901760
    %v1261 = vsub.f32 %v1259, %v1260
    %v1262 = vand.u32 %v1261, 4294901760
    %1263 = vmatpush.msra.mxu0 %v1262
    %v1264 = vand.u32 %v80, 4294901760
    %v1265 = vsub.f32 %v80, %v1264
    %v1266 = vand.u32 %v1265, 4294901760
    %v1267 = vsub.f32 %v1265, %v1266
    %v1268 = vand.u32 %v1267, 4294901760
    %1269 = vmatpush.msra.mxu0 %v1268
    %v1270 = vand.u32 %v79, 4294901760
    %v1271 = vsub.f32 %v79, %v1270
    %v1272 = vand.u32 %v1271, 4294901760
    %v1273 = vsub.f32 %v1271, %v1272
    %v1274 = vand.u32 %v1273, 4294901760
    %1275 = vmatpush.msra.mxu0 %v1274
    %v1276 = vand.u32 %v78, 4294901760
    %v1277 = vsub.f32 %v78, %v1276
    %v1278 = vand.u32 %v1277, 4294901760
    %v1279 = vsub.f32 %v1277, %v1278
    %v1280 = vand.u32 %v1279, 4294901760
    %1281 = vmatpush.msra.mxu0 %v1280
    %v1282 = vand.u32 %v77, 4294901760
    %v1283 = vsub.f32 %v77, %v1282
    %v1284 = vand.u32 %v1283, 4294901760
    %v1285 = vsub.f32 %v1283, %v1284
    %v1286 = vand.u32 %v1285, 4294901760
    %1287 = vmatpush.msra.mxu0 %v1286
    %v1288 = vand.u32 %v76, 4294901760
    %v1289 = vsub.f32 %v76, %v1288
    %v1290 = vand.u32 %v1289, 4294901760
    %v1291 = vsub.f32 %v1289, %v1290
    %v1292 = vand.u32 %v1291, 4294901760
    %1293 = vmatpush.msra.mxu0 %v1292
    %v1294 = vand.u32 %v75, 4294901760
    %v1295 = vsub.f32 %v75, %v1294
    %v1296 = vand.u32 %v1295, 4294901760
    %v1297 = vsub.f32 %v1295, %v1296
    %v1298 = vand.u32 %v1297, 4294901760
    %1299 = vmatpush.msra.mxu0 %v1298
    %v1300 = vand.u32 %v74, 4294901760
    %v1301 = vsub.f32 %v74, %v1300
    %v1302 = vand.u32 %v1301, 4294901760
    %v1303 = vsub.f32 %v1301, %v1302
    %v1304 = vand.u32 %v1303, 4294901760
    %1305 = vmatpush.msra.mxu0 %v1304
    %v1306 = vand.u32 %v73, 4294901760
    %v1307 = vsub.f32 %v73, %v1306
    %v1308 = vand.u32 %v1307, 4294901760
    %v1309 = vsub.f32 %v1307, %v1308
    %v1310 = vand.u32 %v1309, 4294901760
    %1311 = vmatpush.msra.mxu0 %v1310
    %v1312 = vand.u32 %v72, 4294901760
    %v1313 = vsub.f32 %v72, %v1312
    %v1314 = vand.u32 %v1313, 4294901760
    %v1315 = vsub.f32 %v1313, %v1314
    %v1316 = vand.u32 %v1315, 4294901760
    %1317 = vmatpush.msra.mxu0 %v1316
    %v1318 = vand.u32 %v71, 4294901760
    %v1319 = vsub.f32 %v71, %v1318
    %v1320 = vand.u32 %v1319, 4294901760
    %v1321 = vsub.f32 %v1319, %v1320
    %v1322 = vand.u32 %v1321, 4294901760
    %1323 = vmatpush.msra.mxu0 %v1322
    %v1324 = vand.u32 %v151, 4294901760
    %1325 = vmatmul.f32.gmra.mxu0 %v1324
    %v1326 = vpop.f32.mrf.mxu0
    %v1327 = vadd.f32 %v1226, %v1326
    %1328 = vdwg.mxu0
    %v1329 = vand.u32 %v86, 4294901760
    %v1330 = vsub.f32 %v86, %v1329
    %1331 = vmatpush.msra.mxu0 %v1330
    %v1332 = vand.u32 %v85, 4294901760
    %v1333 = vsub.f32 %v85, %v1332
    %1334 = vmatpush.msra.mxu0 %v1333
    %v1335 = vand.u32 %v84, 4294901760
    %v1336 = vsub.f32 %v84, %v1335
    %1337 = vmatpush.msra.mxu0 %v1336
    %v1338 = vand.u32 %v83, 4294901760
    %v1339 = vsub.f32 %v83, %v1338
    %1340 = vmatpush.msra.mxu0 %v1339
    %v1341 = vand.u32 %v82, 4294901760
    %v1342 = vsub.f32 %v82, %v1341
    %1343 = vmatpush.msra.mxu0 %v1342
    %v1344 = vand.u32 %v81, 4294901760
    %v1345 = vsub.f32 %v81, %v1344
    %1346 = vmatpush.msra.mxu0 %v1345
    %v1347 = vand.u32 %v80, 4294901760
    %v1348 = vsub.f32 %v80, %v1347
    %1349 = vmatpush.msra.mxu0 %v1348
    %v1350 = vand.u32 %v79, 4294901760
    %v1351 = vsub.f32 %v79, %v1350
    %1352 = vmatpush.msra.mxu0 %v1351
    %v1353 = vand.u32 %v78, 4294901760
    %v1354 = vsub.f32 %v78, %v1353
    %1355 = vmatpush.msra.mxu0 %v1354
    %v1356 = vand.u32 %v77, 4294901760
    %v1357 = vsub.f32 %v77, %v1356
    %1358 = vmatpush.msra.mxu0 %v1357
    %v1359 = vand.u32 %v76, 4294901760
    %v1360 = vsub.f32 %v76, %v1359
    %1361 = vmatpush.msra.mxu0 %v1360
    %v1362 = vand.u32 %v75, 4294901760
    %v1363 = vsub.f32 %v75, %v1362
    %1364 = vmatpush.msra.mxu0 %v1363
    %v1365 = vand.u32 %v74, 4294901760
    %v1366 = vsub.f32 %v74, %v1365
    %1367 = vmatpush.msra.mxu0 %v1366
    %v1368 = vand.u32 %v73, 4294901760
    %v1369 = vsub.f32 %v73, %v1368
    %1370 = vmatpush.msra.mxu0 %v1369
    %v1371 = vand.u32 %v72, 4294901760
    %v1372 = vsub.f32 %v72, %v1371
    %1373 = vmatpush.msra.mxu0 %v1372
    %v1374 = vand.u32 %v71, 4294901760
    %v1375 = vsub.f32 %v71, %v1374
    %1376 = vmatpush.msra.mxu0 %v1375
    %v1377 = vand.u32 %v151, 4294901760
    %v1378 = vsub.f32 %v151, %v1377
    %1379 = vmatmul.f32.gmra.mxu0 %v1378
    %v1380 = vpop.f32.mrf.mxu0
    %v1381 = vadd.f32 %v1327, %v1380
    %1382 = vdwg.mxu0
    %v1383 = vand.u32 %v86, 4294901760
    %1384 = vmatpush.msra.mxu0 %v1383
    %v1385 = vand.u32 %v85, 4294901760
    %1386 = vmatpush.msra.mxu0 %v1385
    %v1387 = vand.u32 %v84, 4294901760
    %1388 = vmatpush.msra.mxu0 %v1387
    %v1389 = vand.u32 %v83, 4294901760
    %1390 = vmatpush.msra.mxu0 %v1389
    %v1391 = vand.u32 %v82, 4294901760
    %1392 = vmatpush.msra.mxu0 %v1391
    %v1393 = vand.u32 %v81, 4294901760
    %1394 = vmatpush.msra.mxu0 %v1393
    %v1395 = vand.u32 %v80, 4294901760
    %1396 = vmatpush.msra.mxu0 %v1395
    %v1397 = vand.u32 %v79, 4294901760
    %1398 = vmatpush.msra.mxu0 %v1397
    %v1399 = vand.u32 %v78, 4294901760
    %1400 = vmatpush.msra.mxu0 %v1399
    %v1401 = vand.u32 %v77, 4294901760
    %1402 = vmatpush.msra.mxu0 %v1401
    %v1403 = vand.u32 %v76, 4294901760
    %1404 = vmatpush.msra.mxu0 %v1403
    %v1405 = vand.u32 %v75, 4294901760
    %1406 = vmatpush.msra.mxu0 %v1405
    %v1407 = vand.u32 %v74, 4294901760
    %1408 = vmatpush.msra.mxu0 %v1407
    %v1409 = vand.u32 %v73, 4294901760
    %1410 = vmatpush.msra.mxu0 %v1409
    %v1411 = vand.u32 %v72, 4294901760
    %1412 = vmatpush.msra.mxu0 %v1411
    %v1413 = vand.u32 %v71, 4294901760
    %1414 = vmatpush.msra.mxu0 %v1413
    %v1415 = vand.u32 %v151, 4294901760
    %v1416 = vsub.f32 %v151, %v1415
    %v1417 = vand.u32 %v1416, 4294901760
    %1418 = vmatmul.f32.gmra.mxu0 %v1417
    %v1419 = vpop.f32.mrf.mxu0
    %v1420 = vadd.f32 %v1381, %v1419
    %1421 = vdwg.mxu0
    %v1422 = vand.u32 %v86, 4294901760
    %v1423 = vsub.f32 %v86, %v1422
    %v1424 = vand.u32 %v1423, 4294901760
    %1425 = vmatpush.msra.mxu0 %v1424
    %v1426 = vand.u32 %v85, 4294901760
    %v1427 = vsub.f32 %v85, %v1426
    %v1428 = vand.u32 %v1427, 4294901760
    %1429 = vmatpush.msra.mxu0 %v1428
    %v1430 = vand.u32 %v84, 4294901760
    %v1431 = vsub.f32 %v84, %v1430
    %v1432 = vand.u32 %v1431, 4294901760
    %1433 = vmatpush.msra.mxu0 %v1432
    %v1434 = vand.u32 %v83, 4294901760
    %v1435 = vsub.f32 %v83, %v1434
    %v1436 = vand.u32 %v1435, 4294901760
    %1437 = vmatpush.msra.mxu0 %v1436
    %v1438 = vand.u32 %v82, 4294901760
    %v1439 = vsub.f32 %v82, %v1438
    %v1440 = vand.u32 %v1439, 4294901760
    %1441 = vmatpush.msra.mxu0 %v1440
    %v1442 = vand.u32 %v81, 4294901760
    %v1443 = vsub.f32 %v81, %v1442
    %v1444 = vand.u32 %v1443, 4294901760
    %1445 = vmatpush.msra.mxu0 %v1444
    %v1446 = vand.u32 %v80, 4294901760
    %v1447 = vsub.f32 %v80, %v1446
    %v1448 = vand.u32 %v1447, 4294901760
    %1449 = vmatpush.msra.mxu0 %v1448
    %v1450 = vand.u32 %v79, 4294901760
    %v1451 = vsub.f32 %v79, %v1450
    %v1452 = vand.u32 %v1451, 4294901760
    %1453 = vmatpush.msra.mxu0 %v1452
    %v1454 = vand.u32 %v78, 4294901760
    %v1455 = vsub.f32 %v78, %v1454
    %v1456 = vand.u32 %v1455, 4294901760
    %1457 = vmatpush.msra.mxu0 %v1456
    %v1458 = vand.u32 %v77, 4294901760
    %v1459 = vsub.f32 %v77, %v1458
    %v1460 = vand.u32 %v1459, 4294901760
    %1461 = vmatpush.msra.mxu0 %v1460
    %v1462 = vand.u32 %v76, 4294901760
    %v1463 = vsub.f32 %v76, %v1462
    %v1464 = vand.u32 %v1463, 4294901760
    %1465 = vmatpush.msra.mxu0 %v1464
    %v1466 = vand.u32 %v75, 4294901760
    %v1467 = vsub.f32 %v75, %v1466
    %v1468 = vand.u32 %v1467, 4294901760
    %1469 = vmatpush.msra.mxu0 %v1468
    %v1470 = vand.u32 %v74, 4294901760
    %v1471 = vsub.f32 %v74, %v1470
    %v1472 = vand.u32 %v1471, 4294901760
    %1473 = vmatpush.msra.mxu0 %v1472
    %v1474 = vand.u32 %v73, 4294901760
    %v1475 = vsub.f32 %v73, %v1474
    %v1476 = vand.u32 %v1475, 4294901760
    %1477 = vmatpush.msra.mxu0 %v1476
    %v1478 = vand.u32 %v72, 4294901760
    %v1479 = vsub.f32 %v72, %v1478
    %v1480 = vand.u32 %v1479, 4294901760
    %1481 = vmatpush.msra.mxu0 %v1480
    %v1482 = vand.u32 %v71, 4294901760
    %v1483 = vsub.f32 %v71, %v1482
    %v1484 = vand.u32 %v1483, 4294901760
    %1485 = vmatpush.msra.mxu0 %v1484
    %v1486 = vand.u32 %v151, 4294901760
    %1487 = vmatmul.f32.gmra.mxu0 %v1486
    %v1488 = vpop.f32.mrf.mxu0
    %v1489 = vadd.f32 %v1420, %v1488
    %1490 = vdwg.mxu0
    %v1491 = vand.u32 %v86, 4294901760
    %1492 = vmatpush.msra.mxu0 %v1491
    %v1493 = vand.u32 %v85, 4294901760
    %1494 = vmatpush.msra.mxu0 %v1493
    %v1495 = vand.u32 %v84, 4294901760
    %1496 = vmatpush.msra.mxu0 %v1495
    %v1497 = vand.u32 %v83, 4294901760
    %1498 = vmatpush.msra.mxu0 %v1497
    %v1499 = vand.u32 %v82, 4294901760
    %1500 = vmatpush.msra.mxu0 %v1499
    %v1501 = vand.u32 %v81, 4294901760
    %1502 = vmatpush.msra.mxu0 %v1501
    %v1503 = vand.u32 %v80, 4294901760
    %1504 = vmatpush.msra.mxu0 %v1503
    %v1505 = vand.u32 %v79, 4294901760
    %1506 = vmatpush.msra.mxu0 %v1505
    %v1507 = vand.u32 %v78, 4294901760
    %1508 = vmatpush.msra.mxu0 %v1507
    %v1509 = vand.u32 %v77, 4294901760
    %1510 = vmatpush.msra.mxu0 %v1509
    %v1511 = vand.u32 %v76, 4294901760
    %1512 = vmatpush.msra.mxu0 %v1511
    %v1513 = vand.u32 %v75, 4294901760
    %1514 = vmatpush.msra.mxu0 %v1513
    %v1515 = vand.u32 %v74, 4294901760
    %1516 = vmatpush.msra.mxu0 %v1515
    %v1517 = vand.u32 %v73, 4294901760
    %1518 = vmatpush.msra.mxu0 %v1517
    %v1519 = vand.u32 %v72, 4294901760
    %1520 = vmatpush.msra.mxu0 %v1519
    %v1521 = vand.u32 %v71, 4294901760
    %1522 = vmatpush.msra.mxu0 %v1521
    %v1523 = vand.u32 %v151, 4294901760
    %1524 = vmatmul.f32.gmra.mxu0 %v1523
    %v1525 = vpop.f32.mrf.mxu0
    %v1526 = vadd.f32 %v1489, %v1525
    %1527 = vdwg.mxu0
    %v1528 = vand.u32 %v102, 4294901760
    %1529 = vmatpush.msra.mxu0 %v1528
    %v1530 = vand.u32 %v101, 4294901760
    %1531 = vmatpush.msra.mxu0 %v1530
    %v1532 = vand.u32 %v100, 4294901760
    %1533 = vmatpush.msra.mxu0 %v1532
    %v1534 = vand.u32 %v99, 4294901760
    %1535 = vmatpush.msra.mxu0 %v1534
    %v1536 = vand.u32 %v98, 4294901760
    %1537 = vmatpush.msra.mxu0 %v1536
    %v1538 = vand.u32 %v97, 4294901760
    %1539 = vmatpush.msra.mxu0 %v1538
    %v1540 = vand.u32 %v96, 4294901760
    %1541 = vmatpush.msra.mxu0 %v1540
    %v1542 = vand.u32 %v95, 4294901760
    %1543 = vmatpush.msra.mxu0 %v1542
    %v1544 = vand.u32 %v94, 4294901760
    %1545 = vmatpush.msra.mxu0 %v1544
    %v1546 = vand.u32 %v93, 4294901760
    %1547 = vmatpush.msra.mxu0 %v1546
    %v1548 = vand.u32 %v92, 4294901760
    %1549 = vmatpush.msra.mxu0 %v1548
    %v1550 = vand.u32 %v91, 4294901760
    %1551 = vmatpush.msra.mxu0 %v1550
    %v1552 = vand.u32 %v90, 4294901760
    %1553 = vmatpush.msra.mxu0 %v1552
    %v1554 = vand.u32 %v89, 4294901760
    %1555 = vmatpush.msra.mxu0 %v1554
    %v1556 = vand.u32 %v88, 4294901760
    %1557 = vmatpush.msra.mxu0 %v1556
    %v1558 = vand.u32 %v87, 4294901760
    %1559 = vmatpush.msra.mxu0 %v1558
    %v1560 = vand.u32 %v152, 4294901760
    %v1561 = vsub.f32 %v152, %v1560
    %v1562 = vand.u32 %v1561, 4294901760
    %v1563 = vsub.f32 %v1561, %v1562
    %v1564 = vand.u32 %v1563, 4294901760
    %1565 = vmatmul.f32.gmra.mxu0 %v1564
    %v1566 = vpop.f32.mrf.mxu0
    %v1567 = vadd.f32 %v1526, %v1566
    %1568 = vdwg.mxu0
    %v1569 = vand.u32 %v102, 4294901760
    %v1570 = vsub.f32 %v102, %v1569
    %v1571 = vand.u32 %v1570, 4294901760
    %v1572 = vsub.f32 %v1570, %v1571
    %v1573 = vand.u32 %v1572, 4294901760
    %1574 = vmatpush.msra.mxu0 %v1573
    %v1575 = vand.u32 %v101, 4294901760
    %v1576 = vsub.f32 %v101, %v1575
    %v1577 = vand.u32 %v1576, 4294901760
    %v1578 = vsub.f32 %v1576, %v1577
    %v1579 = vand.u32 %v1578, 4294901760
    %1580 = vmatpush.msra.mxu0 %v1579
    %v1581 = vand.u32 %v100, 4294901760
    %v1582 = vsub.f32 %v100, %v1581
    %v1583 = vand.u32 %v1582, 4294901760
    %v1584 = vsub.f32 %v1582, %v1583
    %v1585 = vand.u32 %v1584, 4294901760
    %1586 = vmatpush.msra.mxu0 %v1585
    %v1587 = vand.u32 %v99, 4294901760
    %v1588 = vsub.f32 %v99, %v1587
    %v1589 = vand.u32 %v1588, 4294901760
    %v1590 = vsub.f32 %v1588, %v1589
    %v1591 = vand.u32 %v1590, 4294901760
    %1592 = vmatpush.msra.mxu0 %v1591
    %v1593 = vand.u32 %v98, 4294901760
    %v1594 = vsub.f32 %v98, %v1593
    %v1595 = vand.u32 %v1594, 4294901760
    %v1596 = vsub.f32 %v1594, %v1595
    %v1597 = vand.u32 %v1596, 4294901760
    %1598 = vmatpush.msra.mxu0 %v1597
    %v1599 = vand.u32 %v97, 4294901760
    %v1600 = vsub.f32 %v97, %v1599
    %v1601 = vand.u32 %v1600, 4294901760
    %v1602 = vsub.f32 %v1600, %v1601
    %v1603 = vand.u32 %v1602, 4294901760
    %1604 = vmatpush.msra.mxu0 %v1603
    %v1605 = vand.u32 %v96, 4294901760
    %v1606 = vsub.f32 %v96, %v1605
    %v1607 = vand.u32 %v1606, 4294901760
    %v1608 = vsub.f32 %v1606, %v1607
    %v1609 = vand.u32 %v1608, 4294901760
    %1610 = vmatpush.msra.mxu0 %v1609
    %v1611 = vand.u32 %v95, 4294901760
    %v1612 = vsub.f32 %v95, %v1611
    %v1613 = vand.u32 %v1612, 4294901760
    %v1614 = vsub.f32 %v1612, %v1613
    %v1615 = vand.u32 %v1614, 4294901760
    %1616 = vmatpush.msra.mxu0 %v1615
    %v1617 = vand.u32 %v94, 4294901760
    %v1618 = vsub.f32 %v94, %v1617
    %v1619 = vand.u32 %v1618, 4294901760
    %v1620 = vsub.f32 %v1618, %v1619
    %v1621 = vand.u32 %v1620, 4294901760
    %1622 = vmatpush.msra.mxu0 %v1621
    %v1623 = vand.u32 %v93, 4294901760
    %v1624 = vsub.f32 %v93, %v1623
    %v1625 = vand.u32 %v1624, 4294901760
    %v1626 = vsub.f32 %v1624, %v1625
    %v1627 = vand.u32 %v1626, 4294901760
    %1628 = vmatpush.msra.mxu0 %v1627
    %v1629 = vand.u32 %v92, 4294901760
    %v1630 = vsub.f32 %v92, %v1629
    %v1631 = vand.u32 %v1630, 4294901760
    %v1632 = vsub.f32 %v1630, %v1631
    %v1633 = vand.u32 %v1632, 4294901760
    %1634 = vmatpush.msra.mxu0 %v1633
    %v1635 = vand.u32 %v91, 4294901760
    %v1636 = vsub.f32 %v91, %v1635
    %v1637 = vand.u32 %v1636, 4294901760
    %v1638 = vsub.f32 %v1636, %v1637
    %v1639 = vand.u32 %v1638, 4294901760
    %1640 = vmatpush.msra.mxu0 %v1639
    %v1641 = vand.u32 %v90, 4294901760
    %v1642 = vsub.f32 %v90, %v1641
    %v1643 = vand.u32 %v1642, 4294901760
    %v1644 = vsub.f32 %v1642, %v1643
    %v1645 = vand.u32 %v1644, 4294901760
    %1646 = vmatpush.msra.mxu0 %v1645
    %v1647 = vand.u32 %v89, 4294901760
    %v1648 = vsub.f32 %v89, %v1647
    %v1649 = vand.u32 %v1648, 4294901760
    %v1650 = vsub.f32 %v1648, %v1649
    %v1651 = vand.u32 %v1650, 4294901760
    %1652 = vmatpush.msra.mxu0 %v1651
    %v1653 = vand.u32 %v88, 4294901760
    %v1654 = vsub.f32 %v88, %v1653
    %v1655 = vand.u32 %v1654, 4294901760
    %v1656 = vsub.f32 %v1654, %v1655
    %v1657 = vand.u32 %v1656, 4294901760
    %1658 = vmatpush.msra.mxu0 %v1657
    %v1659 = vand.u32 %v87, 4294901760
    %v1660 = vsub.f32 %v87, %v1659
    %v1661 = vand.u32 %v1660, 4294901760
    %v1662 = vsub.f32 %v1660, %v1661
    %v1663 = vand.u32 %v1662, 4294901760
    %1664 = vmatpush.msra.mxu0 %v1663
    %v1665 = vand.u32 %v152, 4294901760
    %1666 = vmatmul.f32.gmra.mxu0 %v1665
    %v1667 = vpop.f32.mrf.mxu0
    %v1668 = vadd.f32 %v1567, %v1667
    %1669 = vdwg.mxu0
    %v1670 = vand.u32 %v102, 4294901760
    %v1671 = vsub.f32 %v102, %v1670
    %1672 = vmatpush.msra.mxu0 %v1671
    %v1673 = vand.u32 %v101, 4294901760
    %v1674 = vsub.f32 %v101, %v1673
    %1675 = vmatpush.msra.mxu0 %v1674
    %v1676 = vand.u32 %v100, 4294901760
    %v1677 = vsub.f32 %v100, %v1676
    %1678 = vmatpush.msra.mxu0 %v1677
    %v1679 = vand.u32 %v99, 4294901760
    %v1680 = vsub.f32 %v99, %v1679
    %1681 = vmatpush.msra.mxu0 %v1680
    %v1682 = vand.u32 %v98, 4294901760
    %v1683 = vsub.f32 %v98, %v1682
    %1684 = vmatpush.msra.mxu0 %v1683
    %v1685 = vand.u32 %v97, 4294901760
    %v1686 = vsub.f32 %v97, %v1685
    %1687 = vmatpush.msra.mxu0 %v1686
    %v1688 = vand.u32 %v96, 4294901760
    %v1689 = vsub.f32 %v96, %v1688
    %1690 = vmatpush.msra.mxu0 %v1689
    %v1691 = vand.u32 %v95, 4294901760
    %v1692 = vsub.f32 %v95, %v1691
    %1693 = vmatpush.msra.mxu0 %v1692
    %v1694 = vand.u32 %v94, 4294901760
    %v1695 = vsub.f32 %v94, %v1694
    %1696 = vmatpush.msra.mxu0 %v1695
    %v1697 = vand.u32 %v93, 4294901760
    %v1698 = vsub.f32 %v93, %v1697
    %1699 = vmatpush.msra.mxu0 %v1698
    %v1700 = vand.u32 %v92, 4294901760
    %v1701 = vsub.f32 %v92, %v1700
    %1702 = vmatpush.msra.mxu0 %v1701
    %v1703 = vand.u32 %v91, 4294901760
    %v1704 = vsub.f32 %v91, %v1703
    %1705 = vmatpush.msra.mxu0 %v1704
    %v1706 = vand.u32 %v90, 4294901760
    %v1707 = vsub.f32 %v90, %v1706
    %1708 = vmatpush.msra.mxu0 %v1707
    %v1709 = vand.u32 %v89, 4294901760
    %v1710 = vsub.f32 %v89, %v1709
    %1711 = vmatpush.msra.mxu0 %v1710
    %v1712 = vand.u32 %v88, 4294901760
    %v1713 = vsub.f32 %v88, %v1712
    %1714 = vmatpush.msra.mxu0 %v1713
    %v1715 = vand.u32 %v87, 4294901760
    %v1716 = vsub.f32 %v87, %v1715
    %1717 = vmatpush.msra.mxu0 %v1716
    %v1718 = vand.u32 %v152, 4294901760
    %v1719 = vsub.f32 %v152, %v1718
    %1720 = vmatmul.f32.gmra.mxu0 %v1719
    %v1721 = vpop.f32.mrf.mxu0
    %v1722 = vadd.f32 %v1668, %v1721
    %1723 = vdwg.mxu0
    %v1724 = vand.u32 %v102, 4294901760
    %1725 = vmatpush.msra.mxu0 %v1724
    %v1726 = vand.u32 %v101, 4294901760
    %1727 = vmatpush.msra.mxu0 %v1726
    %v1728 = vand.u32 %v100, 4294901760
    %1729 = vmatpush.msra.mxu0 %v1728
    %v1730 = vand.u32 %v99, 4294901760
    %1731 = vmatpush.msra.mxu0 %v1730
    %v1732 = vand.u32 %v98, 4294901760
    %1733 = vmatpush.msra.mxu0 %v1732
    %v1734 = vand.u32 %v97, 4294901760
    %1735 = vmatpush.msra.mxu0 %v1734
    %v1736 = vand.u32 %v96, 4294901760
    %1737 = vmatpush.msra.mxu0 %v1736
    %v1738 = vand.u32 %v95, 4294901760
    %1739 = vmatpush.msra.mxu0 %v1738
    %v1740 = vand.u32 %v94, 4294901760
    %1741 = vmatpush.msra.mxu0 %v1740
    %v1742 = vand.u32 %v93, 4294901760
    %1743 = vmatpush.msra.mxu0 %v1742
    %v1744 = vand.u32 %v92, 4294901760
    %1745 = vmatpush.msra.mxu0 %v1744
    %v1746 = vand.u32 %v91, 4294901760
    %1747 = vmatpush.msra.mxu0 %v1746
    %v1748 = vand.u32 %v90, 4294901760
    %1749 = vmatpush.msra.mxu0 %v1748
    %v1750 = vand.u32 %v89, 4294901760
    %1751 = vmatpush.msra.mxu0 %v1750
    %v1752 = vand.u32 %v88, 4294901760
    %1753 = vmatpush.msra.mxu0 %v1752
    %v1754 = vand.u32 %v87, 4294901760
    %1755 = vmatpush.msra.mxu0 %v1754
    %v1756 = vand.u32 %v152, 4294901760
    %v1757 = vsub.f32 %v152, %v1756
    %v1758 = vand.u32 %v1757, 4294901760
    %1759 = vmatmul.f32.gmra.mxu0 %v1758
    %v1760 = vpop.f32.mrf.mxu0
    %v1761 = vadd.f32 %v1722, %v1760
    %1762 = vdwg.mxu0
    %v1763 = vand.u32 %v102, 4294901760
    %v1764 = vsub.f32 %v102, %v1763
    %v1765 = vand.u32 %v1764, 4294901760
    %1766 = vmatpush.msra.mxu0 %v1765
    %v1767 = vand.u32 %v101, 4294901760
    %v1768 = vsub.f32 %v101, %v1767
    %v1769 = vand.u32 %v1768, 4294901760
    %1770 = vmatpush.msra.mxu0 %v1769
    %v1771 = vand.u32 %v100, 4294901760
    %v1772 = vsub.f32 %v100, %v1771
    %v1773 = vand.u32 %v1772, 4294901760
    %1774 = vmatpush.msra.mxu0 %v1773
    %v1775 = vand.u32 %v99, 4294901760
    %v1776 = vsub.f32 %v99, %v1775
    %v1777 = vand.u32 %v1776, 4294901760
    %1778 = vmatpush.msra.mxu0 %v1777
    %v1779 = vand.u32 %v98, 4294901760
    %v1780 = vsub.f32 %v98, %v1779
    %v1781 = vand.u32 %v1780, 4294901760
    %1782 = vmatpush.msra.mxu0 %v1781
    %v1783 = vand.u32 %v97, 4294901760
    %v1784 = vsub.f32 %v97, %v1783
    %v1785 = vand.u32 %v1784, 4294901760
    %1786 = vmatpush.msra.mxu0 %v1785
    %v1787 = vand.u32 %v96, 4294901760
    %v1788 = vsub.f32 %v96, %v1787
    %v1789 = vand.u32 %v1788, 4294901760
    %1790 = vmatpush.msra.mxu0 %v1789
    %v1791 = vand.u32 %v95, 4294901760
    %v1792 = vsub.f32 %v95, %v1791
    %v1793 = vand.u32 %v1792, 4294901760
    %1794 = vmatpush.msra.mxu0 %v1793
    %v1795 = vand.u32 %v94, 4294901760
    %v1796 = vsub.f32 %v94, %v1795
    %v1797 = vand.u32 %v1796, 4294901760
    %1798 = vmatpush.msra.mxu0 %v1797
    %v1799 = vand.u32 %v93, 4294901760
    %v1800 = vsub.f32 %v93, %v1799
    %v1801 = vand.u32 %v1800, 4294901760
    %1802 = vmatpush.msra.mxu0 %v1801
    %v1803 = vand.u32 %v92, 4294901760
    %v1804 = vsub.f32 %v92, %v1803
    %v1805 = vand.u32 %v1804, 4294901760
    %1806 = vmatpush.msra.mxu0 %v1805
    %v1807 = vand.u32 %v91, 4294901760
    %v1808 = vsub.f32 %v91, %v1807
    %v1809 = vand.u32 %v1808, 4294901760
    %1810 = vmatpush.msra.mxu0 %v1809
    %v1811 = vand.u32 %v90, 4294901760
    %v1812 = vsub.f32 %v90, %v1811
    %v1813 = vand.u32 %v1812, 4294901760
    %1814 = vmatpush.msra.mxu0 %v1813
    %v1815 = vand.u32 %v89, 4294901760
    %v1816 = vsub.f32 %v89, %v1815
    %v1817 = vand.u32 %v1816, 4294901760
    %1818 = vmatpush.msra.mxu0 %v1817
    %v1819 = vand.u32 %v88, 4294901760
    %v1820 = vsub.f32 %v88, %v1819
    %v1821 = vand.u32 %v1820, 4294901760
    %1822 = vmatpush.msra.mxu0 %v1821
    %v1823 = vand.u32 %v87, 4294901760
    %v1824 = vsub.f32 %v87, %v1823
    %v1825 = vand.u32 %v1824, 4294901760
    %1826 = vmatpush.msra.mxu0 %v1825
    %v1827 = vand.u32 %v152, 4294901760
    %1828 = vmatmul.f32.gmra.mxu0 %v1827
    %v1829 = vpop.f32.mrf.mxu0
    %v1830 = vadd.f32 %v1761, %v1829
    %1831 = vdwg.mxu0
    %v1832 = vand.u32 %v102, 4294901760
    %1833 = vmatpush.msra.mxu0 %v1832
    %v1834 = vand.u32 %v101, 4294901760
    %1835 = vmatpush.msra.mxu0 %v1834
    %v1836 = vand.u32 %v100, 4294901760
    %1837 = vmatpush.msra.mxu0 %v1836
    %v1838 = vand.u32 %v99, 4294901760
    %1839 = vmatpush.msra.mxu0 %v1838
    %v1840 = vand.u32 %v98, 4294901760
    %1841 = vmatpush.msra.mxu0 %v1840
    %v1842 = vand.u32 %v97, 4294901760
    %1843 = vmatpush.msra.mxu0 %v1842
    %v1844 = vand.u32 %v96, 4294901760
    %1845 = vmatpush.msra.mxu0 %v1844
    %v1846 = vand.u32 %v95, 4294901760
    %1847 = vmatpush.msra.mxu0 %v1846
    %v1848 = vand.u32 %v94, 4294901760
    %1849 = vmatpush.msra.mxu0 %v1848
    %v1850 = vand.u32 %v93, 4294901760
    %1851 = vmatpush.msra.mxu0 %v1850
    %v1852 = vand.u32 %v92, 4294901760
    %1853 = vmatpush.msra.mxu0 %v1852
    %v1854 = vand.u32 %v91, 4294901760
    %1855 = vmatpush.msra.mxu0 %v1854
    %v1856 = vand.u32 %v90, 4294901760
    %1857 = vmatpush.msra.mxu0 %v1856
    %v1858 = vand.u32 %v89, 4294901760
    %1859 = vmatpush.msra.mxu0 %v1858
    %v1860 = vand.u32 %v88, 4294901760
    %1861 = vmatpush.msra.mxu0 %v1860
    %v1862 = vand.u32 %v87, 4294901760
    %1863 = vmatpush.msra.mxu0 %v1862
    %v1864 = vand.u32 %v152, 4294901760
    %1865 = vmatmul.f32.gmra.mxu0 %v1864
    %v1866 = vpop.f32.mrf.mxu0
    %v1867 = vadd.f32 %v1830, %v1866
    %1868 = vdwg.mxu0
    %v1869 = vand.u32 %v118, 4294901760
    %1870 = vmatpush.msra.mxu0 %v1869
    %v1871 = vand.u32 %v117, 4294901760
    %1872 = vmatpush.msra.mxu0 %v1871
    %v1873 = vand.u32 %v116, 4294901760
    %1874 = vmatpush.msra.mxu0 %v1873
    %v1875 = vand.u32 %v115, 4294901760
    %1876 = vmatpush.msra.mxu0 %v1875
    %v1877 = vand.u32 %v114, 4294901760
    %1878 = vmatpush.msra.mxu0 %v1877
    %v1879 = vand.u32 %v113, 4294901760
    %1880 = vmatpush.msra.mxu0 %v1879
    %v1881 = vand.u32 %v112, 4294901760
    %1882 = vmatpush.msra.mxu0 %v1881
    %v1883 = vand.u32 %v111, 4294901760
    %1884 = vmatpush.msra.mxu0 %v1883
    %v1885 = vand.u32 %v110, 4294901760
    %1886 = vmatpush.msra.mxu0 %v1885
    %v1887 = vand.u32 %v109, 4294901760
    %1888 = vmatpush.msra.mxu0 %v1887
    %v1889 = vand.u32 %v108, 4294901760
    %1890 = vmatpush.msra.mxu0 %v1889
    %v1891 = vand.u32 %v107, 4294901760
    %1892 = vmatpush.msra.mxu0 %v1891
    %v1893 = vand.u32 %v106, 4294901760
    %1894 = vmatpush.msra.mxu0 %v1893
    %v1895 = vand.u32 %v105, 4294901760
    %1896 = vmatpush.msra.mxu0 %v1895
    %v1897 = vand.u32 %v104, 4294901760
    %1898 = vmatpush.msra.mxu0 %v1897
    %v1899 = vand.u32 %v103, 4294901760
    %1900 = vmatpush.msra.mxu0 %v1899
    %v1901 = vand.u32 %v153, 4294901760
    %v1902 = vsub.f32 %v153, %v1901
    %v1903 = vand.u32 %v1902, 4294901760
    %v1904 = vsub.f32 %v1902, %v1903
    %v1905 = vand.u32 %v1904, 4294901760
    %1906 = vmatmul.f32.gmra.mxu0 %v1905
    %v1907 = vpop.f32.mrf.mxu0
    %v1908 = vadd.f32 %v1867, %v1907
    %1909 = vdwg.mxu0
    %v1910 = vand.u32 %v118, 4294901760
    %v1911 = vsub.f32 %v118, %v1910
    %v1912 = vand.u32 %v1911, 4294901760
    %v1913 = vsub.f32 %v1911, %v1912
    %v1914 = vand.u32 %v1913, 4294901760
    %1915 = vmatpush.msra.mxu0 %v1914
    %v1916 = vand.u32 %v117, 4294901760
    %v1917 = vsub.f32 %v117, %v1916
    %v1918 = vand.u32 %v1917, 4294901760
    %v1919 = vsub.f32 %v1917, %v1918
    %v1920 = vand.u32 %v1919, 4294901760
    %1921 = vmatpush.msra.mxu0 %v1920
    %v1922 = vand.u32 %v116, 4294901760
    %v1923 = vsub.f32 %v116, %v1922
    %v1924 = vand.u32 %v1923, 4294901760
    %v1925 = vsub.f32 %v1923, %v1924
    %v1926 = vand.u32 %v1925, 4294901760
    %1927 = vmatpush.msra.mxu0 %v1926
    %v1928 = vand.u32 %v115, 4294901760
    %v1929 = vsub.f32 %v115, %v1928
    %v1930 = vand.u32 %v1929, 4294901760
    %v1931 = vsub.f32 %v1929, %v1930
    %v1932 = vand.u32 %v1931, 4294901760
    %1933 = vmatpush.msra.mxu0 %v1932
    %v1934 = vand.u32 %v114, 4294901760
    %v1935 = vsub.f32 %v114, %v1934
    %v1936 = vand.u32 %v1935, 4294901760
    %v1937 = vsub.f32 %v1935, %v1936
    %v1938 = vand.u32 %v1937, 4294901760
    %1939 = vmatpush.msra.mxu0 %v1938
    %v1940 = vand.u32 %v113, 4294901760
    %v1941 = vsub.f32 %v113, %v1940
    %v1942 = vand.u32 %v1941, 4294901760
    %v1943 = vsub.f32 %v1941, %v1942
    %v1944 = vand.u32 %v1943, 4294901760
    %1945 = vmatpush.msra.mxu0 %v1944
    %v1946 = vand.u32 %v112, 4294901760
    %v1947 = vsub.f32 %v112, %v1946
    %v1948 = vand.u32 %v1947, 4294901760
    %v1949 = vsub.f32 %v1947, %v1948
    %v1950 = vand.u32 %v1949, 4294901760
    %1951 = vmatpush.msra.mxu0 %v1950
    %v1952 = vand.u32 %v111, 4294901760
    %v1953 = vsub.f32 %v111, %v1952
    %v1954 = vand.u32 %v1953, 4294901760
    %v1955 = vsub.f32 %v1953, %v1954
    %v1956 = vand.u32 %v1955, 4294901760
    %1957 = vmatpush.msra.mxu0 %v1956
    %v1958 = vand.u32 %v110, 4294901760
    %v1959 = vsub.f32 %v110, %v1958
    %v1960 = vand.u32 %v1959, 4294901760
    %v1961 = vsub.f32 %v1959, %v1960
    %v1962 = vand.u32 %v1961, 4294901760
    %1963 = vmatpush.msra.mxu0 %v1962
    %v1964 = vand.u32 %v109, 4294901760
    %v1965 = vsub.f32 %v109, %v1964
    %v1966 = vand.u32 %v1965, 4294901760
    %v1967 = vsub.f32 %v1965, %v1966
    %v1968 = vand.u32 %v1967, 4294901760
    %1969 = vmatpush.msra.mxu0 %v1968
    %v1970 = vand.u32 %v108, 4294901760
    %v1971 = vsub.f32 %v108, %v1970
    %v1972 = vand.u32 %v1971, 4294901760
    %v1973 = vsub.f32 %v1971, %v1972
    %v1974 = vand.u32 %v1973, 4294901760
    %1975 = vmatpush.msra.mxu0 %v1974
    %v1976 = vand.u32 %v107, 4294901760
    %v1977 = vsub.f32 %v107, %v1976
    %v1978 = vand.u32 %v1977, 4294901760
    %v1979 = vsub.f32 %v1977, %v1978
    %v1980 = vand.u32 %v1979, 4294901760
    %1981 = vmatpush.msra.mxu0 %v1980
    %v1982 = vand.u32 %v106, 4294901760
    %v1983 = vsub.f32 %v106, %v1982
    %v1984 = vand.u32 %v1983, 4294901760
    %v1985 = vsub.f32 %v1983, %v1984
    %v1986 = vand.u32 %v1985, 4294901760
    %1987 = vmatpush.msra.mxu0 %v1986
    %v1988 = vand.u32 %v105, 4294901760
    %v1989 = vsub.f32 %v105, %v1988
    %v1990 = vand.u32 %v1989, 4294901760
    %v1991 = vsub.f32 %v1989, %v1990
    %v1992 = vand.u32 %v1991, 4294901760
    %1993 = vmatpush.msra.mxu0 %v1992
    %v1994 = vand.u32 %v104, 4294901760
    %v1995 = vsub.f32 %v104, %v1994
    %v1996 = vand.u32 %v1995, 4294901760
    %v1997 = vsub.f32 %v1995, %v1996
    %v1998 = vand.u32 %v1997, 4294901760
    %1999 = vmatpush.msra.mxu0 %v1998
    %v2000 = vand.u32 %v103, 4294901760
    %v2001 = vsub.f32 %v103, %v2000
    %v2002 = vand.u32 %v2001, 4294901760
    %v2003 = vsub.f32 %v2001, %v2002
    %v2004 = vand.u32 %v2003, 4294901760
    %2005 = vmatpush.msra.mxu0 %v2004
    %v2006 = vand.u32 %v153, 4294901760
    %2007 = vmatmul.f32.gmra.mxu0 %v2006
    %v2008 = vpop.f32.mrf.mxu0
    %v2009 = vadd.f32 %v1908, %v2008
    %2010 = vdwg.mxu0
    %v2011 = vand.u32 %v118, 4294901760
    %v2012 = vsub.f32 %v118, %v2011
    %2013 = vmatpush.msra.mxu0 %v2012
    %v2014 = vand.u32 %v117, 4294901760
    %v2015 = vsub.f32 %v117, %v2014
    %2016 = vmatpush.msra.mxu0 %v2015
    %v2017 = vand.u32 %v116, 4294901760
    %v2018 = vsub.f32 %v116, %v2017
    %2019 = vmatpush.msra.mxu0 %v2018
    %v2020 = vand.u32 %v115, 4294901760
    %v2021 = vsub.f32 %v115, %v2020
    %2022 = vmatpush.msra.mxu0 %v2021
    %v2023 = vand.u32 %v114, 4294901760
    %v2024 = vsub.f32 %v114, %v2023
    %2025 = vmatpush.msra.mxu0 %v2024
    %v2026 = vand.u32 %v113, 4294901760
    %v2027 = vsub.f32 %v113, %v2026
    %2028 = vmatpush.msra.mxu0 %v2027
    %v2029 = vand.u32 %v112, 4294901760
    %v2030 = vsub.f32 %v112, %v2029
    %2031 = vmatpush.msra.mxu0 %v2030
    %v2032 = vand.u32 %v111, 4294901760
    %v2033 = vsub.f32 %v111, %v2032
    %2034 = vmatpush.msra.mxu0 %v2033
    %v2035 = vand.u32 %v110, 4294901760
    %v2036 = vsub.f32 %v110, %v2035
    %2037 = vmatpush.msra.mxu0 %v2036
    %v2038 = vand.u32 %v109, 4294901760
    %v2039 = vsub.f32 %v109, %v2038
    %2040 = vmatpush.msra.mxu0 %v2039
    %v2041 = vand.u32 %v108, 4294901760
    %v2042 = vsub.f32 %v108, %v2041
    %2043 = vmatpush.msra.mxu0 %v2042
    %v2044 = vand.u32 %v107, 4294901760
    %v2045 = vsub.f32 %v107, %v2044
    %2046 = vmatpush.msra.mxu0 %v2045
    %v2047 = vand.u32 %v106, 4294901760
    %v2048 = vsub.f32 %v106, %v2047
    %2049 = vmatpush.msra.mxu0 %v2048
    %v2050 = vand.u32 %v105, 4294901760
    %v2051 = vsub.f32 %v105, %v2050
    %2052 = vmatpush.msra.mxu0 %v2051
    %v2053 = vand.u32 %v104, 4294901760
    %v2054 = vsub.f32 %v104, %v2053
    %2055 = vmatpush.msra.mxu0 %v2054
    %v2056 = vand.u32 %v103, 4294901760
    %v2057 = vsub.f32 %v103, %v2056
    %2058 = vmatpush.msra.mxu0 %v2057
    %v2059 = vand.u32 %v153, 4294901760
    %v2060 = vsub.f32 %v153, %v2059
    %2061 = vmatmul.f32.gmra.mxu0 %v2060
    %v2062 = vpop.f32.mrf.mxu0
    %v2063 = vadd.f32 %v2009, %v2062
    %2064 = vdwg.mxu0
    %v2065 = vand.u32 %v118, 4294901760
    %2066 = vmatpush.msra.mxu0 %v2065
    %v2067 = vand.u32 %v117, 4294901760
    %2068 = vmatpush.msra.mxu0 %v2067
    %v2069 = vand.u32 %v116, 4294901760
    %2070 = vmatpush.msra.mxu0 %v2069
    %v2071 = vand.u32 %v115, 4294901760
    %2072 = vmatpush.msra.mxu0 %v2071
    %v2073 = vand.u32 %v114, 4294901760
    %2074 = vmatpush.msra.mxu0 %v2073
    %v2075 = vand.u32 %v113, 4294901760
    %2076 = vmatpush.msra.mxu0 %v2075
    %v2077 = vand.u32 %v112, 4294901760
    %2078 = vmatpush.msra.mxu0 %v2077
    %v2079 = vand.u32 %v111, 4294901760
    %2080 = vmatpush.msra.mxu0 %v2079
    %v2081 = vand.u32 %v110, 4294901760
    %2082 = vmatpush.msra.mxu0 %v2081
    %v2083 = vand.u32 %v109, 4294901760
    %2084 = vmatpush.msra.mxu0 %v2083
    %v2085 = vand.u32 %v108, 4294901760
    %2086 = vmatpush.msra.mxu0 %v2085
    %v2087 = vand.u32 %v107, 4294901760
    %2088 = vmatpush.msra.mxu0 %v2087
    %v2089 = vand.u32 %v106, 4294901760
    %2090 = vmatpush.msra.mxu0 %v2089
    %v2091 = vand.u32 %v105, 4294901760
    %2092 = vmatpush.msra.mxu0 %v2091
    %v2093 = vand.u32 %v104, 4294901760
    %2094 = vmatpush.msra.mxu0 %v2093
    %v2095 = vand.u32 %v103, 4294901760
    %2096 = vmatpush.msra.mxu0 %v2095
    %v2097 = vand.u32 %v153, 4294901760
    %v2098 = vsub.f32 %v153, %v2097
    %v2099 = vand.u32 %v2098, 4294901760
    %2100 = vmatmul.f32.gmra.mxu0 %v2099
    %v2101 = vpop.f32.mrf.mxu0
    %v2102 = vadd.f32 %v2063, %v2101
    %2103 = vdwg.mxu0
    %v2104 = vand.u32 %v118, 4294901760
    %v2105 = vsub.f32 %v118, %v2104
    %v2106 = vand.u32 %v2105, 4294901760
    %2107 = vmatpush.msra.mxu0 %v2106
    %v2108 = vand.u32 %v117, 4294901760
    %v2109 = vsub.f32 %v117, %v2108
    %v2110 = vand.u32 %v2109, 4294901760
    %2111 = vmatpush.msra.mxu0 %v2110
    %v2112 = vand.u32 %v116, 4294901760
    %v2113 = vsub.f32 %v116, %v2112
    %v2114 = vand.u32 %v2113, 4294901760
    %2115 = vmatpush.msra.mxu0 %v2114
    %v2116 = vand.u32 %v115, 4294901760
    %v2117 = vsub.f32 %v115, %v2116
    %v2118 = vand.u32 %v2117, 4294901760
    %2119 = vmatpush.msra.mxu0 %v2118
    %v2120 = vand.u32 %v114, 4294901760
    %v2121 = vsub.f32 %v114, %v2120
    %v2122 = vand.u32 %v2121, 4294901760
    %2123 = vmatpush.msra.mxu0 %v2122
    %v2124 = vand.u32 %v113, 4294901760
    %v2125 = vsub.f32 %v113, %v2124
    %v2126 = vand.u32 %v2125, 4294901760
    %2127 = vmatpush.msra.mxu0 %v2126
    %v2128 = vand.u32 %v112, 4294901760
    %v2129 = vsub.f32 %v112, %v2128
    %v2130 = vand.u32 %v2129, 4294901760
    %2131 = vmatpush.msra.mxu0 %v2130
    %v2132 = vand.u32 %v111, 4294901760
    %v2133 = vsub.f32 %v111, %v2132
    %v2134 = vand.u32 %v2133, 4294901760
    %2135 = vmatpush.msra.mxu0 %v2134
    %v2136 = vand.u32 %v110, 4294901760
    %v2137 = vsub.f32 %v110, %v2136
    %v2138 = vand.u32 %v2137, 4294901760
    %2139 = vmatpush.msra.mxu0 %v2138
    %v2140 = vand.u32 %v109, 4294901760
    %v2141 = vsub.f32 %v109, %v2140
    %v2142 = vand.u32 %v2141, 4294901760
    %2143 = vmatpush.msra.mxu0 %v2142
    %v2144 = vand.u32 %v108, 4294901760
    %v2145 = vsub.f32 %v108, %v2144
    %v2146 = vand.u32 %v2145, 4294901760
    %2147 = vmatpush.msra.mxu0 %v2146
    %v2148 = vand.u32 %v107, 4294901760
    %v2149 = vsub.f32 %v107, %v2148
    %v2150 = vand.u32 %v2149, 4294901760
    %2151 = vmatpush.msra.mxu0 %v2150
    %v2152 = vand.u32 %v106, 4294901760
    %v2153 = vsub.f32 %v106, %v2152
    %v2154 = vand.u32 %v2153, 4294901760
    %2155 = vmatpush.msra.mxu0 %v2154
    %v2156 = vand.u32 %v105, 4294901760
    %v2157 = vsub.f32 %v105, %v2156
    %v2158 = vand.u32 %v2157, 4294901760
    %2159 = vmatpush.msra.mxu0 %v2158
    %v2160 = vand.u32 %v104, 4294901760
    %v2161 = vsub.f32 %v104, %v2160
    %v2162 = vand.u32 %v2161, 4294901760
    %2163 = vmatpush.msra.mxu0 %v2162
    %v2164 = vand.u32 %v103, 4294901760
    %v2165 = vsub.f32 %v103, %v2164
    %v2166 = vand.u32 %v2165, 4294901760
    %2167 = vmatpush.msra.mxu0 %v2166
    %v2168 = vand.u32 %v153, 4294901760
    %2169 = vmatmul.f32.gmra.mxu0 %v2168
    %v2170 = vpop.f32.mrf.mxu0
    %v2171 = vadd.f32 %v2102, %v2170
    %2172 = vdwg.mxu0
    %v2173 = vand.u32 %v118, 4294901760
    %2174 = vmatpush.msra.mxu0 %v2173
    %v2175 = vand.u32 %v117, 4294901760
    %2176 = vmatpush.msra.mxu0 %v2175
    %v2177 = vand.u32 %v116, 4294901760
    %2178 = vmatpush.msra.mxu0 %v2177
    %v2179 = vand.u32 %v115, 4294901760
    %2180 = vmatpush.msra.mxu0 %v2179
    %v2181 = vand.u32 %v114, 4294901760
    %2182 = vmatpush.msra.mxu0 %v2181
    %v2183 = vand.u32 %v113, 4294901760
    %2184 = vmatpush.msra.mxu0 %v2183
    %v2185 = vand.u32 %v112, 4294901760
    %2186 = vmatpush.msra.mxu0 %v2185
    %v2187 = vand.u32 %v111, 4294901760
    %2188 = vmatpush.msra.mxu0 %v2187
    %v2189 = vand.u32 %v110, 4294901760
    %2190 = vmatpush.msra.mxu0 %v2189
    %v2191 = vand.u32 %v109, 4294901760
    %2192 = vmatpush.msra.mxu0 %v2191
    %v2193 = vand.u32 %v108, 4294901760
    %2194 = vmatpush.msra.mxu0 %v2193
    %v2195 = vand.u32 %v107, 4294901760
    %2196 = vmatpush.msra.mxu0 %v2195
    %v2197 = vand.u32 %v106, 4294901760
    %2198 = vmatpush.msra.mxu0 %v2197
    %v2199 = vand.u32 %v105, 4294901760
    %2200 = vmatpush.msra.mxu0 %v2199
    %v2201 = vand.u32 %v104, 4294901760
    %2202 = vmatpush.msra.mxu0 %v2201
    %v2203 = vand.u32 %v103, 4294901760
    %2204 = vmatpush.msra.mxu0 %v2203
    %v2205 = vand.u32 %v153, 4294901760
    %2206 = vmatmul.f32.gmra.mxu0 %v2205
    %v2207 = vpop.f32.mrf.mxu0
    %v2208 = vadd.f32 %v2171, %v2207
    %2209 = vdwg.mxu0
    %2210 = vmatpush.msra.mxu0 0.0
    %2211 = vmatpush.msra.mxu0 0.0
    %2212 = vmatpush.msra.mxu0 0.0
    %2213 = vmatpush.msra.mxu0 0.0
    %2214 = vmatpush.msra.mxu0 0.0
    %2215 = vmatpush.msra.mxu0 0.0
    %2216 = vmatpush.msra.mxu0 0.0
    %2217 = vmatpush.msra.mxu0 0.0
    %2218 = vmatpush.msra.mxu0 0.0
    %2219 = vmatpush.msra.mxu0 0.0
    %2220 = vmatpush.msra.mxu0 0.0
    %2221 = vmatpush.msra.mxu0 0.0
    %2222 = vmatpush.msra.mxu0 0.0
    %2223 = vmatpush.msra.mxu0 0.0
    %v2224 = vand.u32 %v120, 4294901760
    %2225 = vmatpush.msra.mxu0 %v2224
    %v2226 = vand.u32 %v119, 4294901760
    %2227 = vmatpush.msra.mxu0 %v2226
    %v2228 = vand.u32 %v162, 4294901760
    %v2229 = vsub.f32 %v162, %v2228
    %v2230 = vand.u32 %v2229, 4294901760
    %v2231 = vsub.f32 %v2229, %v2230
    %v2232 = vand.u32 %v2231, 4294901760
    %2233 = vmatmul.f32.gmra.mxu0 %v2232
    %v2234 = vpop.f32.mrf.mxu0
    %v2235 = vadd.f32 %v2208, %v2234
    %2236 = vdwg.mxu0
    %2237 = vmatpush.msra.mxu0 0.0
    %2238 = vmatpush.msra.mxu0 0.0
    %2239 = vmatpush.msra.mxu0 0.0
    %2240 = vmatpush.msra.mxu0 0.0
    %2241 = vmatpush.msra.mxu0 0.0
    %2242 = vmatpush.msra.mxu0 0.0
    %2243 = vmatpush.msra.mxu0 0.0
    %2244 = vmatpush.msra.mxu0 0.0
    %2245 = vmatpush.msra.mxu0 0.0
    %2246 = vmatpush.msra.mxu0 0.0
    %2247 = vmatpush.msra.mxu0 0.0
    %2248 = vmatpush.msra.mxu0 0.0
    %2249 = vmatpush.msra.mxu0 0.0
    %2250 = vmatpush.msra.mxu0 0.0
    %v2251 = vand.u32 %v120, 4294901760
    %v2252 = vsub.f32 %v120, %v2251
    %v2253 = vand.u32 %v2252, 4294901760
    %v2254 = vsub.f32 %v2252, %v2253
    %v2255 = vand.u32 %v2254, 4294901760
    %2256 = vmatpush.msra.mxu0 %v2255
    %v2257 = vand.u32 %v119, 4294901760
    %v2258 = vsub.f32 %v119, %v2257
    %v2259 = vand.u32 %v2258, 4294901760
    %v2260 = vsub.f32 %v2258, %v2259
    %v2261 = vand.u32 %v2260, 4294901760
    %2262 = vmatpush.msra.mxu0 %v2261
    %v2263 = vand.u32 %v162, 4294901760
    %2264 = vmatmul.f32.gmra.mxu0 %v2263
    %v2265 = vpop.f32.mrf.mxu0
    %v2266 = vadd.f32 %v2235, %v2265
    %2267 = vdwg.mxu0
    %2268 = vmatpush.msra.mxu0 0.0
    %2269 = vmatpush.msra.mxu0 0.0
    %2270 = vmatpush.msra.mxu0 0.0
    %2271 = vmatpush.msra.mxu0 0.0
    %2272 = vmatpush.msra.mxu0 0.0
    %2273 = vmatpush.msra.mxu0 0.0
    %2274 = vmatpush.msra.mxu0 0.0
    %2275 = vmatpush.msra.mxu0 0.0
    %2276 = vmatpush.msra.mxu0 0.0
    %2277 = vmatpush.msra.mxu0 0.0
    %2278 = vmatpush.msra.mxu0 0.0
    %2279 = vmatpush.msra.mxu0 0.0
    %2280 = vmatpush.msra.mxu0 0.0
    %2281 = vmatpush.msra.mxu0 0.0
    %v2282 = vand.u32 %v120, 4294901760
    %v2283 = vsub.f32 %v120, %v2282
    %2284 = vmatpush.msra.mxu0 %v2283
    %v2285 = vand.u32 %v119, 4294901760
    %v2286 = vsub.f32 %v119, %v2285
    %2287 = vmatpush.msra.mxu0 %v2286
    %v2288 = vand.u32 %v162, 4294901760
    %v2289 = vsub.f32 %v162, %v2288
    %2290 = vmatmul.f32.gmra.mxu0 %v2289
    %v2291 = vpop.f32.mrf.mxu0
    %v2292 = vadd.f32 %v2266, %v2291
    %2293 = vdwg.mxu0
    %2294 = vmatpush.msra.mxu0 0.0
    %2295 = vmatpush.msra.mxu0 0.0
    %2296 = vmatpush.msra.mxu0 0.0
    %2297 = vmatpush.msra.mxu0 0.0
    %2298 = vmatpush.msra.mxu0 0.0
    %2299 = vmatpush.msra.mxu0 0.0
    %2300 = vmatpush.msra.mxu0 0.0
    %2301 = vmatpush.msra.mxu0 0.0
    %2302 = vmatpush.msra.mxu0 0.0
    %2303 = vmatpush.msra.mxu0 0.0
    %2304 = vmatpush.msra.mxu0 0.0
    %2305 = vmatpush.msra.mxu0 0.0
    %2306 = vmatpush.msra.mxu0 0.0
    %2307 = vmatpush.msra.mxu0 0.0
    %v2308 = vand.u32 %v120, 4294901760
    %2309 = vmatpush.msra.mxu0 %v2308
    %v2310 = vand.u32 %v119, 4294901760
    %2311 = vmatpush.msra.mxu0 %v2310
    %v2312 = vand.u32 %v162, 4294901760
    %v2313 = vsub.f32 %v162, %v2312
    %v2314 = vand.u32 %v2313, 4294901760
    %2315 = vmatmul.f32.gmra.mxu0 %v2314
    %v2316 = vpop.f32.mrf.mxu0
    %v2317 = vadd.f32 %v2292, %v2316
    %2318 = vdwg.mxu0
    %2319 = vmatpush.msra.mxu0 0.0
    %2320 = vmatpush.msra.mxu0 0.0
    %2321 = vmatpush.msra.mxu0 0.0
    %2322 = vmatpush.msra.mxu0 0.0
    %2323 = vmatpush.msra.mxu0 0.0
    %2324 = vmatpush.msra.mxu0 0.0
    %2325 = vmatpush.msra.mxu0 0.0
    %2326 = vmatpush.msra.mxu0 0.0
    %2327 = vmatpush.msra.mxu0 0.0
    %2328 = vmatpush.msra.mxu0 0.0
    %2329 = vmatpush.msra.mxu0 0.0
    %2330 = vmatpush.msra.mxu0 0.0
    %2331 = vmatpush.msra.mxu0 0.0
    %2332 = vmatpush.msra.mxu0 0.0
    %v2333 = vand.u32 %v120, 4294901760
    %v2334 = vsub.f32 %v120, %v2333
    %v2335 = vand.u32 %v2334, 4294901760
    %2336 = vmatpush.msra.mxu0 %v2335
    %v2337 = vand.u32 %v119, 4294901760
    %v2338 = vsub.f32 %v119, %v2337
    %v2339 = vand.u32 %v2338, 4294901760
    %2340 = vmatpush.msra.mxu0 %v2339
    %v2341 = vand.u32 %v162, 4294901760
    %2342 = vmatmul.f32.gmra.mxu0 %v2341
    %v2343 = vpop.f32.mrf.mxu0
    %v2344 = vadd.f32 %v2317, %v2343
    %2345 = vdwg.mxu0
    %2346 = vmatpush.msra.mxu0 0.0
    %2347 = vmatpush.msra.mxu0 0.0
    %2348 = vmatpush.msra.mxu0 0.0
    %2349 = vmatpush.msra.mxu0 0.0
    %2350 = vmatpush.msra.mxu0 0.0
    %2351 = vmatpush.msra.mxu0 0.0
    %2352 = vmatpush.msra.mxu0 0.0
    %2353 = vmatpush.msra.mxu0 0.0
    %2354 = vmatpush.msra.mxu0 0.0
    %2355 = vmatpush.msra.mxu0 0.0
    %2356 = vmatpush.msra.mxu0 0.0
    %2357 = vmatpush.msra.mxu0 0.0
    %2358 = vmatpush.msra.mxu0 0.0
    %2359 = vmatpush.msra.mxu0 0.0
    %v2360 = vand.u32 %v120, 4294901760
    %2361 = vmatpush.msra.mxu0 %v2360
    %v2362 = vand.u32 %v119, 4294901760
    %2363 = vmatpush.msra.mxu0 %v2362
    %v2364 = vand.u32 %v162, 4294901760
    %2365 = vmatmul.f32.gmra.mxu0 %v2364
    %v2366 = vpop.f32.mrf.mxu0
    %v2367 = vadd.f32 %v2344, %v2366
    %2368 = vdwg.mxu0
    %vm2369 = vcmp.gt.f32.partialorder %v2367, 0.0
    %v2370 = vmul.f32 %v2367, 0.04
    %v2371 = vsel %vm2369, %v2367, %v2370
    %vm2372 = vcmask 80896
    %2373 = vst.msk [vmem:[#allocation2] sm:$0xff] %vm2372, %v2371
    // Predicated region
    $region14: #{neroro_forward.1} parent=1 // pred_check
      _
    $region15: #{neroro_forward.1} parent=1 // pred_check_branch
      %2375 = sbr.rel (0) target = $region17
    $region16: #{neroro_forward.1} parent=1 // pred_region
      %2377 = vsyncadd [#allocation3], 96
      %s2378 = sshll.u32 [#allocation2], 4
      %s2379 = int_to_ptr.vmem [resolvable:$true] %s2378
      %s2380 = sshll.u32 %s3, 4
      %s2381 = int_to_ptr.hbm [resolvable:$true] %s2380
      %2386 = dma.vmem_to_hbm [thread:$0]  %s2379, 32, %s2381, [#allocation3], 32, 32, 2
    $region17: #{neroro_forward.1} parent=1 // pred_fallthru
      _
    // Predicated region
    $region18: #{neroro_forward.1} parent=1 // pred_check
      _
    $region19: #{neroro_forward.1} parent=1 // pred_check_branch
      %2388 = sbr.rel (0) target = $region21
    $region20: #{neroro_forward.1} parent=1 // pred_region
      %2390 = dma.done [#allocation3], 128
    $region21: #{neroro_forward.1} parent=1 // pred_fallthru
      _
    %2391 = vsyncpa [#allocation3], 1

</llo_original>
